<compile_context>
chip_gen: v5e
topology: v5e:2x2
jax: 0.10.0
libtpu: 0.0.40
codegen_flags: <defaults>
</compile_context>

<pallas_src>
import functools

import jax
import jax.numpy as jnp
import numpy as np
from jax.experimental import pallas as pl
from jax.experimental.pallas import tpu as pltpu

EPS = 1e-5   # BatchNorm eps (PyTorch default)
CPAD = 8     # sublane-aligned channel padding (all channel counts here <= 8)


# ---------------------------------------------------------------------------
# host-side constant builders (numpy, cached by shape -> baked jit constants)
# ---------------------------------------------------------------------------
@functools.lru_cache(maxsize=None)
def _upsample_pad_matrix(h, w, H, W, B):
    """(B*h*w, B*H*W) block-diagonal matrix: bilinear 2x upsample
    (align_corners=True) + diff-pad, acting on the lane-flattened (b,y,x) axis."""
    Hup, Wup = 2 * h, 2 * w

    def lin(n_in, n_out):
        L = np.zeros((n_out, n_in), np.float32)
        for i in range(n_out):
            src = 0.0 if n_in == 1 else i * (n_in - 1) / (n_out - 1)
            lo = int(np.floor(src))
            hi = min(lo + 1, n_in - 1)
            f = src - lo
            L[i, lo] += 1.0 - f
            L[i, hi] += f
        return L

    Ly, Lx = lin(h, Hup), lin(w, Wup)
    py, px = (H - Hup) // 2, (W - Wup) // 2
    M = np.zeros((h * w, H * W), np.float32)
    for Y in range(H):
        for X in range(W):
            yy, xx = Y - py, X - px
            if 0 <= yy < Hup and 0 <= xx < Wup:
                M[:, Y * W + X] = np.outer(Ly[yy], Lx[xx]).reshape(-1)
    return np.kron(np.eye(B, dtype=np.float32), M)            # (B*hw, B*HW)


@functools.lru_cache(maxsize=None)
def _tap_masks(H, W, B):
    """(9, B*H*W) validity masks for the 9 taps of a 3x3 / pad=1 conv.
    Zero at every circular-roll wrap position (row, image and batch bounds)."""
    hh = np.arange(H)[:, None]
    ww = np.arange(W)[None, :]
    m = np.zeros((9, H * W), np.float32)
    k = 0
    for dy in (-1, 0, 1):
        for dx in (-1, 0, 1):
            valid = ((hh + dy >= 0) & (hh + dy < H) &
                     (ww + dx >= 0) & (ww + dx < W))
            m[k] = valid.astype(np.float32).reshape(-1)
            k += 1
    return np.tile(m, (1, B))                                  # (9, B*HW)


@functools.lru_cache(maxsize=None)
def _batch_bcast_matrix(B, HW):
    """(B, B*HW) matrix E with E[b, b*HW + s] = 1 (per-batch lane broadcast)."""
    return np.kron(np.eye(B, dtype=np.float32), np.ones((1, HW), np.float32))


def _roll_shifts(W, N):
    """Circular-roll shift for each tap so rolled[l] == x[l + dy*W + dx]."""
    return tuple((-(dy * W + dx)) % N for dy in (-1, 0, 1) for dx in (-1, 0, 1))


# ---------------------------------------------------------------------------
# the fused Pallas kernel
# ---------------------------------------------------------------------------
def _make_kernel(B, H, W, TD):
    HW = H * W
    N = B * HW
    inv_n = 1.0 / float(N)
    shifts = _roll_shifts(W, N)

    def kernel(x1_ref, x2_ref, tT_ref, up_ref, mask_ref, erep_ref, pp_ref,
               w1a_ref, w1b_ref, w2_ref, o_ref):
        masks = mask_ref[...]                                  # (9, N)
        mask_rows = [masks[k:k + 1, :] for k in range(9)]      # 9 x (1, N)

        # --- bilinear 2x upsample + diff-pad of x1: one block-diag matmul ---
        x1 = jnp.dot(x1_ref[...], up_ref[...],
                     preferred_element_type=jnp.float32)        # (CPAD, N)

        # --- time MLP + broadcast add (stays in the (C, B*HW) layout) ---
        pp = pp_ref[...]                                        # (CPAD, 16)
        wt = pp[:, :TD]                                         # (CPAD, TD)
        bt = pp[:, TD:TD + 1]                                   # (CPAD, 1)
        g1 = pp[:, TD + 1:TD + 2]
        b1 = pp[:, TD + 2:TD + 3]
        g2 = pp[:, TD + 3:TD + 4]
        b2 = pp[:, TD + 4:TD + 5]
        temb = jnp.dot(wt, tT_ref[...],
                       preferred_element_type=jnp.float32) + bt  # (CPAD, B)
        x1 = x1 + jnp.dot(temb, erep_ref[...],
                          preferred_element_type=jnp.float32)    # (CPAD, N)

        def taps(v):
            # im2col via 9 masked circular lane-rolls -> (9*CPAD, N).
            # Every chunk is a full 8-row sublane group (unmasked stores);
            # the masks zero every wrap (row / image / batch boundary).
            chunks = []
            for k in range(9):
                if shifts[k] == 0:
                    chunks.append(v)                 # center tap, mask == 1
                else:
                    chunks.append(pltpu.roll(v, shift=shifts[k], axis=1)
                                  * mask_rows[k])
            return jnp.concatenate(chunks, axis=0)              # (72, N)

        def bn_relu(y, gamma, beta):
            # fused single-pass train-mode BatchNorm (biased var) + ReLU
            mean = jnp.sum(y, axis=-1, keepdims=True) * inv_n   # (CPAD, 1)
            msq = jnp.sum(y * y, axis=-1, keepdims=True) * inv_n
            var = msq - mean * mean
            scale = gamma * jax.lax.rsqrt(var + EPS)
            shift = beta - mean * scale
            return jnp.maximum(y * scale + shift, 0.0)

        # --- conv1 (3x3/pad=1/no bias) on cat([x2, x1]) as two summed matmuls ---
        h1 = (jnp.dot(w1a_ref[...], taps(x2_ref[...]),
                      preferred_element_type=jnp.float32)
              + jnp.dot(w1b_ref[...], taps(x1),
                        preferred_element_type=jnp.float32))     # (CPAD, N)
        y1 = bn_relu(h1, g1, b1)

        # --- conv2 + BN + ReLU ---
        h2 = jnp.dot(w2_ref[...], taps(y1),
                     preferred_element_type=jnp.float32)         # (CPAD, N)
        o_ref[...] = bn_relu(h2, g2, b2)                         # dense (8, N)

    return kernel


# ---------------------------------------------------------------------------
# public wrapper (NCHW in / NCHW out, PyTorch-layout params), jitted
# ---------------------------------------------------------------------------
def _pack_conv_weight(w):
    """(Co, Ci, 3, 3) torch layout -> (CPAD, 9*CPAD) tap-major, channel-padded."""
    Co, Ci = w.shape[0], w.shape[1]
    wk = jnp.transpose(w, (0, 2, 3, 1)).reshape(Co, 9, Ci)
    wk = jnp.pad(wk, ((0, CPAD - Co), (0, 0), (0, CPAD - Ci)))
    return wk.reshape(CPAD, 9 * CPAD).astype(jnp.float32)


def _pad_channels_flat(x):
    """(B, C, H, W) -> (CPAD, B*H*W) channel-major lane-dense, zero-padded C."""
    B, C, H, W = x.shape
    xf = jnp.transpose(x, (1, 0, 2, 3)).reshape(C, B * H * W)
    return jnp.pad(xf, ((0, CPAD - C), (0, 0))).astype(jnp.float32)


@jax.jit
def up_forward(x1_nchw, x2_nchw, t, params):
    wt, bt, w1, g1, b1, w2, g2, b2 = params
    B, C1, h, w = x1_nchw.shape
    _, C2, H, W = x2_nchw.shape
    Cout = w2.shape[0]
    TD = t.shape[1]
    HW = H * W
    N = B * HW
    assert max(C1, C2, w1.shape[0], Cout) <= CPAD and TD + 5 <= 16

    # activations: channel-major, lane-dense, channels zero-padded to CPAD
    x1f = _pad_channels_flat(x1_nchw)                        # (CPAD, B*h*w)
    x2f = _pad_channels_flat(x2_nchw)                        # (CPAD, N)
    tT = t.astype(jnp.float32).T                             # (TD, B)

    # baked constants (numpy, lru_cached; become jit constants)
    upmat = jnp.asarray(_upsample_pad_matrix(h, w, H, W, B))  # (B*hw, N)
    masks = jnp.asarray(_tap_masks(H, W, B))                  # (9, N)
    erep = jnp.asarray(_batch_bcast_matrix(B, HW))            # (B, N)

    # pack the tiny per-channel params into ONE (CPAD, 16) array
    def padc(v):
        v = v.reshape(-1).astype(jnp.float32)
        return jnp.pad(v, (0, CPAD - v.shape[0]))
    pp = jnp.zeros((CPAD, 16), jnp.float32)
    pp = pp.at[:C1, :TD].set(wt.astype(jnp.float32))          # Linear weight
    pp = pp.at[:, TD].set(padc(bt))                           # Linear bias
    pp = pp.at[:, TD + 1].set(padc(g1))                       # BN1 gamma
    pp = pp.at[:, TD + 2].set(padc(b1))                       # BN1 beta
    pp = pp.at[:, TD + 3].set(padc(g2))                       # BN2 gamma
    pp = pp.at[:, TD + 4].set(padc(b2))                       # BN2 beta

    # conv weights: split conv1 by the [x2, x1] concat; tap-major, padded
    w1a = _pack_conv_weight(w1[:, :C2])                       # x2 half
    w1b = _pack_conv_weight(w1[:, C2:])                       # x1 half
    w2p = _pack_conv_weight(w2)

    vmem = pl.BlockSpec(memory_space=pltpu.MemorySpace.VMEM)
    out = pl.pallas_call(
        _make_kernel(B, H, W, TD),
        out_shape=jax.ShapeDtypeStruct((CPAD, N), jnp.float32),
        in_specs=[vmem] * 10,
        out_specs=vmem,
    )(x1f, x2f, tT, upmat, masks, erep, pp, w1a, w1b, w2p)

    # (CPAD, B*HW) -> (B, Cout, H, W)
    return jnp.transpose(out[:Cout].reshape(Cout, B, H, W), (1, 0, 2, 3))


# ---------------------------------------------------------------------------
# pure-JAX reference (true module semantics) for correctness checking
# ---------------------------------------------------------------------------
def _bilinear_up2x_align_corners_nchw(x):
    B, C, H, W = x.shape
    H2, W2 = 2 * H, 2 * W

    def coords(n_in, n_out):
        if n_in == 1:
            src = jnp.zeros((n_out,), jnp.float32)
        else:
            src = jnp.arange(n_out, dtype=jnp.float32) * (n_in - 1) / (n_out - 1)
        lo = jnp.floor(src).astype(jnp.int32)
        hi = jnp.minimum(lo + 1, n_in - 1)
        f = src - lo.astype(jnp.float32)
        return lo, hi, f

    y0, y1, fy = coords(H, H2)
    x0, x1, fx = coords(W, W2)
    r = (x[:, :, y0, :] * (1.0 - fy)[None, None, :, None]
         + x[:, :, y1, :] * fy[None, None, :, None])
    return (r[:, :, :, x0] * (1.0 - fx)[None, None, None, :]
            + r[:, :, :, x1] * fx[None, None, None, :])


def _conv3x3_ref(x, w):
    return jax.lax.conv_general_dilated(
        x, w, window_strides=(1, 1), padding=((1, 1), (1, 1)),
        dimension_numbers=('NCHW', 'OIHW', 'NCHW'),
        precision=jax.lax.Precision.HIGHEST)


def _bn_relu_ref(y, g, b):
    m = jnp.mean(y, axis=(0, 2, 3), keepdims=True)
    v = jnp.mean((y - m) ** 2, axis=(0, 2, 3), keepdims=True)
    yn = ((y - m) * jax.lax.rsqrt(v + EPS) * g.reshape(1, -1, 1, 1)
          + b.reshape(1, -1, 1, 1))
    return jnp.maximum(yn, 0.0)


def up_forward_ref(x1_nchw, x2_nchw, t, params):
    wt, bt, w1, g1, b1, w2, g2, b2 = params
    x1 = _bilinear_up2x_align_corners_nchw(x1_nchw.astype(jnp.float32))
    x2 = x2_nchw.astype(jnp.float32)
    _, _, H, W = x2.shape
    _, _, Hu, Wu = x1.shape
    dY, dX = H - Hu, W - Wu
    x1 = jnp.pad(x1, ((0, 0), (0, 0),
                      (dY // 2, dY - dY // 2), (dX // 2, dX - dX // 2)))
    temb = jnp.dot(t.astype(jnp.float32), wt.T,
                   precision=jax.lax.Precision.HIGHEST) + bt
    x1 = x1 + temb[:, :, None, None]
    x = jnp.concatenate([x2, x1], axis=1)
    y = _bn_relu_ref(_conv3x3_ref(x, w1), g1, b1)
    return _bn_relu_ref(_conv3x3_ref(y, w2), g2, b2)


if __name__ == "__main__":
    # Module config: Up(in_channels=8, out_channels=4, time_emb_dim=8, bilinear=True)
    B = 2
    in_channels, out_channels, time_dim = 8, 4, 8
    C1 = out_channels            # x1 channels (temb of size out_channels is added)
    C2 = in_channels - C1        # x2 channels so cat([x2, x1]) has in_channels
    Cmid = in_channels // 2      # DoubleConv mid channels
    Cout = out_channels
    H = W = 16                   # x2 spatial; x1 is half resolution

    key = jax.random.PRNGKey(0)
    ks = jax.random.split(key, 11)

    # inputs (NCHW, like PyTorch)
    x1 = jax.random.normal(ks[0], (B, C1, H // 2, W // 2), jnp.float32)
    x2 = jax.random.normal(ks[1], (B, C2, H, W), jnp.float32)
    t = jax.random.normal(ks[2], (B, time_dim), jnp.float32)

    # parameters in PyTorch layouts
    wt = 0.3 * jax.random.normal(ks[3], (C1, time_dim), jnp.float32)    # Linear.weight
    bt = 0.1 * jax.random.normal(ks[4], (C1,), jnp.float32)             # Linear.bias
    w1 = 0.2 * jax.random.normal(ks[5], (Cmid, in_channels, 3, 3), jnp.float32)
    g1 = 1.0 + 0.1 * jax.random.normal(ks[6], (Cmid,), jnp.float32)     # BN1 gamma
    b1 = 0.1 * jax.random.normal(ks[7], (Cmid,), jnp.float32)           # BN1 beta
    w2 = 0.2 * jax.random.normal(ks[8], (Cout, Cmid, 3, 3), jnp.float32)
    g2 = 1.0 + 0.1 * jax.random.normal(ks[9], (Cout,), jnp.float32)     # BN2 gamma
    b2 = 0.1 * jax.random.normal(ks[10], (Cout,), jnp.float32)          # BN2 beta
    params = (wt, bt, w1, g1, b1, w2, g2, b2)

    out = jax.block_until_ready(up_forward(x1, x2, t, params))
    ref = up_forward_ref(x1, x2, t, params)

    assert out.shape == (B, Cout, H, W), out.shape
    np.testing.assert_allclose(np.asarray(out), np.asarray(ref),
                               rtol=2e-4, atol=2e-4)
    print("KERNEL_OK")
</pallas_src>

<mosaic_0001>
module attributes {stable_mosaic.version = 11 : i64} {
  func.func @kernel(%arg0: memref<8x128xf32, #tpu.memory_space<vmem>>, %arg1: memref<8x512xf32, #tpu.memory_space<vmem>>, %arg2: memref<8x2xf32, #tpu.memory_space<vmem>>, %arg3: memref<128x512xf32, #tpu.memory_space<vmem>>, %arg4: memref<9x512xf32, #tpu.memory_space<vmem>>, %arg5: memref<2x512xf32, #tpu.memory_space<vmem>>, %arg6: memref<8x16xf32, #tpu.memory_space<vmem>>, %arg7: memref<8x72xf32, #tpu.memory_space<vmem>>, %arg8: memref<8x72xf32, #tpu.memory_space<vmem>>, %arg9: memref<8x72xf32, #tpu.memory_space<vmem>>, %arg10: memref<8x512xf32, #tpu.memory_space<vmem>>) attributes {dimension_semantics = [], scalar_prefetch = 0 : i64, scratch_operands = 0 : i64, tpu.core_type = #tpu.core_type<tc>} {
    %c0 = arith.constant 0 : index
    %c0_0 = arith.constant 0 : index
    %0 = vector.load %arg4[%c0, %c0_0] : memref<9x512xf32, #tpu.memory_space<vmem>>, vector<9x512xf32>
    %1 = vector.extract_strided_slice %0 {offsets = [0, 0], sizes = [1, 512], strides = [1, 1]} : vector<9x512xf32> to vector<1x512xf32>
    %2 = vector.extract_strided_slice %0 {offsets = [1, 0], sizes = [1, 512], strides = [1, 1]} : vector<9x512xf32> to vector<1x512xf32>
    %3 = vector.extract_strided_slice %0 {offsets = [2, 0], sizes = [1, 512], strides = [1, 1]} : vector<9x512xf32> to vector<1x512xf32>
    %4 = vector.extract_strided_slice %0 {offsets = [3, 0], sizes = [1, 512], strides = [1, 1]} : vector<9x512xf32> to vector<1x512xf32>
    %5 = vector.extract_strided_slice %0 {offsets = [5, 0], sizes = [1, 512], strides = [1, 1]} : vector<9x512xf32> to vector<1x512xf32>
    %6 = vector.extract_strided_slice %0 {offsets = [6, 0], sizes = [1, 512], strides = [1, 1]} : vector<9x512xf32> to vector<1x512xf32>
    %7 = vector.extract_strided_slice %0 {offsets = [7, 0], sizes = [1, 512], strides = [1, 1]} : vector<9x512xf32> to vector<1x512xf32>
    %8 = vector.extract_strided_slice %0 {offsets = [8, 0], sizes = [1, 512], strides = [1, 1]} : vector<9x512xf32> to vector<1x512xf32>
    %c0_1 = arith.constant 0 : index
    %c0_2 = arith.constant 0 : index
    %9 = vector.load %arg0[%c0_1, %c0_2] : memref<8x128xf32, #tpu.memory_space<vmem>>, vector<8x128xf32>
    %c0_3 = arith.constant 0 : index
    %c0_4 = arith.constant 0 : index
    %10 = vector.load %arg3[%c0_3, %c0_4] : memref<128x512xf32, #tpu.memory_space<vmem>>, vector<128x512xf32>
    %cst = arith.constant dense<0.000000e+00> : vector<8x512xf32>
    %11 = tpu.matmul %9, %10, %cst {dimension_numbers = #tpu.dot_dimension_numbers<[1], [0], [0], [1], [0, 0, 1, 1], [], []>} : vector<8x128xf32>, vector<128x512xf32>, vector<8x512xf32> -> vector<8x512xf32>
    %c0_5 = arith.constant 0 : index
    %c0_6 = arith.constant 0 : index
    %12 = vector.load %arg6[%c0_5, %c0_6] : memref<8x16xf32, #tpu.memory_space<vmem>>, vector<8x16xf32>
    %13 = vector.extract_strided_slice %12 {offsets = [0, 0], sizes = [8, 8], strides = [1, 1]} : vector<8x16xf32> to vector<8x8xf32>
    %14 = vector.extract_strided_slice %12 {offsets = [0, 8], sizes = [8, 1], strides = [1, 1]} : vector<8x16xf32> to vector<8x1xf32>
    %15 = vector.extract_strided_slice %12 {offsets = [0, 9], sizes = [8, 1], strides = [1, 1]} : vector<8x16xf32> to vector<8x1xf32>
    %16 = vector.extract_strided_slice %12 {offsets = [0, 10], sizes = [8, 1], strides = [1, 1]} : vector<8x16xf32> to vector<8x1xf32>
    %17 = vector.extract_strided_slice %12 {offsets = [0, 11], sizes = [8, 1], strides = [1, 1]} : vector<8x16xf32> to vector<8x1xf32>
    %18 = vector.extract_strided_slice %12 {offsets = [0, 12], sizes = [8, 1], strides = [1, 1]} : vector<8x16xf32> to vector<8x1xf32>
    %c0_7 = arith.constant 0 : index
    %c0_8 = arith.constant 0 : index
    %19 = vector.load %arg2[%c0_7, %c0_8] : memref<8x2xf32, #tpu.memory_space<vmem>>, vector<8x2xf32>
    %cst_9 = arith.constant dense<0.000000e+00> : vector<8x2xf32>
    %20 = tpu.matmul %13, %19, %cst_9 {dimension_numbers = #tpu.dot_dimension_numbers<[1], [0], [0], [1], [0, 0, 1, 1], [], []>} : vector<8x8xf32>, vector<8x2xf32>, vector<8x2xf32> -> vector<8x2xf32>
    %21 = vector.broadcast %14 : vector<8x1xf32> to vector<8x2xf32>
    %22 = arith.addf %20, %21 : vector<8x2xf32>
    %c0_10 = arith.constant 0 : index
    %c0_11 = arith.constant 0 : index
    %23 = vector.load %arg5[%c0_10, %c0_11] : memref<2x512xf32, #tpu.memory_space<vmem>>, vector<2x512xf32>
    %cst_12 = arith.constant dense<0.000000e+00> : vector<8x512xf32>
    %24 = tpu.matmul %22, %23, %cst_12 {dimension_numbers = #tpu.dot_dimension_numbers<[1], [0], [0], [1], [0, 0, 1, 1], [], []>} : vector<8x2xf32>, vector<2x512xf32>, vector<8x512xf32> -> vector<8x512xf32>
    %25 = arith.addf %11, %24 : vector<8x512xf32>
    %c0_13 = arith.constant 0 : index
    %c0_14 = arith.constant 0 : index
    %26 = vector.load %arg7[%c0_13, %c0_14] : memref<8x72xf32, #tpu.memory_space<vmem>>, vector<8x72xf32>
    %c0_15 = arith.constant 0 : index
    %c0_16 = arith.constant 0 : index
    %27 = vector.load %arg1[%c0_15, %c0_16] : memref<8x512xf32, #tpu.memory_space<vmem>>, vector<8x512xf32>
    %c17_i32 = arith.constant 17 : i32
    %28 = tpu.dynamic_rotate %27 by %c17_i32 dim 1 : vector<8x512xf32>, i32 -> vector<8x512xf32>
    %29 = vector.broadcast %1 : vector<1x512xf32> to vector<8x512xf32>
    %30 = arith.mulf %28, %29 : vector<8x512xf32>
    %c16_i32 = arith.constant 16 : i32
    %31 = tpu.dynamic_rotate %27 by %c16_i32 dim 1 : vector<8x512xf32>, i32 -> vector<8x512xf32>
    %32 = vector.broadcast %2 : vector<1x512xf32> to vector<8x512xf32>
    %33 = arith.mulf %31, %32 : vector<8x512xf32>
    %c15_i32 = arith.constant 15 : i32
    %34 = tpu.dynamic_rotate %27 by %c15_i32 dim 1 : vector<8x512xf32>, i32 -> vector<8x512xf32>
    %35 = vector.broadcast %3 : vector<1x512xf32> to vector<8x512xf32>
    %36 = arith.mulf %34, %35 : vector<8x512xf32>
    %c1_i32 = arith.constant 1 : i32
    %37 = tpu.dynamic_rotate %27 by %c1_i32 dim 1 : vector<8x512xf32>, i32 -> vector<8x512xf32>
    %38 = vector.broadcast %4 : vector<1x512xf32> to vector<8x512xf32>
    %39 = arith.mulf %37, %38 : vector<8x512xf32>
    %c511_i32 = arith.constant 511 : i32
    %40 = tpu.dynamic_rotate %27 by %c511_i32 dim 1 : vector<8x512xf32>, i32 -> vector<8x512xf32>
    %41 = vector.broadcast %5 : vector<1x512xf32> to vector<8x512xf32>
    %42 = arith.mulf %40, %41 : vector<8x512xf32>
    %c497_i32 = arith.constant 497 : i32
    %43 = tpu.dynamic_rotate %27 by %c497_i32 dim 1 : vector<8x512xf32>, i32 -> vector<8x512xf32>
    %44 = vector.broadcast %6 : vector<1x512xf32> to vector<8x512xf32>
    %45 = arith.mulf %43, %44 : vector<8x512xf32>
    %c496_i32 = arith.constant 496 : i32
    %46 = tpu.dynamic_rotate %27 by %c496_i32 dim 1 : vector<8x512xf32>, i32 -> vector<8x512xf32>
    %47 = vector.broadcast %7 : vector<1x512xf32> to vector<8x512xf32>
    %48 = arith.mulf %46, %47 : vector<8x512xf32>
    %c495_i32 = arith.constant 495 : i32
    %49 = tpu.dynamic_rotate %27 by %c495_i32 dim 1 : vector<8x512xf32>, i32 -> vector<8x512xf32>
    %50 = vector.broadcast %8 : vector<1x512xf32> to vector<8x512xf32>
    %51 = arith.mulf %49, %50 : vector<8x512xf32>
    %52 = tpu.concatenate %30, %33, %36, %39, %27, %42, %45, %48, %51 in 0 : vector<8x512xf32>, vector<8x512xf32>, vector<8x512xf32>, vector<8x512xf32>, vector<8x512xf32>, vector<8x512xf32>, vector<8x512xf32>, vector<8x512xf32>, vector<8x512xf32> -> vector<72x512xf32>
    %cst_17 = arith.constant dense<0.000000e+00> : vector<8x512xf32>
    %53 = tpu.matmul %26, %52, %cst_17 {dimension_numbers = #tpu.dot_dimension_numbers<[1], [0], [0], [1], [0, 0, 1, 1], [], []>} : vector<8x72xf32>, vector<72x512xf32>, vector<8x512xf32> -> vector<8x512xf32>
    %c0_18 = arith.constant 0 : index
    %c0_19 = arith.constant 0 : index
    %54 = vector.load %arg8[%c0_18, %c0_19] : memref<8x72xf32, #tpu.memory_space<vmem>>, vector<8x72xf32>
    %c17_i32_20 = arith.constant 17 : i32
    %55 = tpu.dynamic_rotate %25 by %c17_i32_20 dim 1 : vector<8x512xf32>, i32 -> vector<8x512xf32>
    %56 = vector.broadcast %1 : vector<1x512xf32> to vector<8x512xf32>
    %57 = arith.mulf %55, %56 : vector<8x512xf32>
    %c16_i32_21 = arith.constant 16 : i32
    %58 = tpu.dynamic_rotate %25 by %c16_i32_21 dim 1 : vector<8x512xf32>, i32 -> vector<8x512xf32>
    %59 = vector.broadcast %2 : vector<1x512xf32> to vector<8x512xf32>
    %60 = arith.mulf %58, %59 : vector<8x512xf32>
    %c15_i32_22 = arith.constant 15 : i32
    %61 = tpu.dynamic_rotate %25 by %c15_i32_22 dim 1 : vector<8x512xf32>, i32 -> vector<8x512xf32>
    %62 = vector.broadcast %3 : vector<1x512xf32> to vector<8x512xf32>
    %63 = arith.mulf %61, %62 : vector<8x512xf32>
    %c1_i32_23 = arith.constant 1 : i32
    %64 = tpu.dynamic_rotate %25 by %c1_i32_23 dim 1 : vector<8x512xf32>, i32 -> vector<8x512xf32>
    %65 = vector.broadcast %4 : vector<1x512xf32> to vector<8x512xf32>
    %66 = arith.mulf %64, %65 : vector<8x512xf32>
    %c511_i32_24 = arith.constant 511 : i32
    %67 = tpu.dynamic_rotate %25 by %c511_i32_24 dim 1 : vector<8x512xf32>, i32 -> vector<8x512xf32>
    %68 = vector.broadcast %5 : vector<1x512xf32> to vector<8x512xf32>
    %69 = arith.mulf %67, %68 : vector<8x512xf32>
    %c497_i32_25 = arith.constant 497 : i32
    %70 = tpu.dynamic_rotate %25 by %c497_i32_25 dim 1 : vector<8x512xf32>, i32 -> vector<8x512xf32>
    %71 = vector.broadcast %6 : vector<1x512xf32> to vector<8x512xf32>
    %72 = arith.mulf %70, %71 : vector<8x512xf32>
    %c496_i32_26 = arith.constant 496 : i32
    %73 = tpu.dynamic_rotate %25 by %c496_i32_26 dim 1 : vector<8x512xf32>, i32 -> vector<8x512xf32>
    %74 = vector.broadcast %7 : vector<1x512xf32> to vector<8x512xf32>
    %75 = arith.mulf %73, %74 : vector<8x512xf32>
    %c495_i32_27 = arith.constant 495 : i32
    %76 = tpu.dynamic_rotate %25 by %c495_i32_27 dim 1 : vector<8x512xf32>, i32 -> vector<8x512xf32>
    %77 = vector.broadcast %8 : vector<1x512xf32> to vector<8x512xf32>
    %78 = arith.mulf %76, %77 : vector<8x512xf32>
    %79 = tpu.concatenate %57, %60, %63, %66, %25, %69, %72, %75, %78 in 0 : vector<8x512xf32>, vector<8x512xf32>, vector<8x512xf32>, vector<8x512xf32>, vector<8x512xf32>, vector<8x512xf32>, vector<8x512xf32>, vector<8x512xf32>, vector<8x512xf32> -> vector<72x512xf32>
    %cst_28 = arith.constant dense<0.000000e+00> : vector<8x512xf32>
    %80 = tpu.matmul %54, %79, %cst_28 {dimension_numbers = #tpu.dot_dimension_numbers<[1], [0], [0], [1], [0, 0, 1, 1], [], []>} : vector<8x72xf32>, vector<72x512xf32>, vector<8x512xf32> -> vector<8x512xf32>
    %81 = arith.addf %53, %80 : vector<8x512xf32>
    %cst_29 = arith.constant dense<0.000000e+00> : vector<8xf32>
    %82 = vector.multi_reduction <add>, %81, %cst_29 [1] : vector<8x512xf32> to vector<8xf32>
    %83 = vector.shape_cast %82 : vector<8xf32> to vector<8x1xf32>
    %cst_30 = arith.constant 0.001953125 : f32
    %84 = vector.broadcast %cst_30 : f32 to vector<8x1xf32>
    %85 = arith.mulf %83, %84 : vector<8x1xf32>
    %86 = arith.mulf %81, %81 : vector<8x512xf32>
    %cst_31 = arith.constant dense<0.000000e+00> : vector<8xf32>
    %87 = vector.multi_reduction <add>, %86, %cst_31 [1] : vector<8x512xf32> to vector<8xf32>
    %88 = vector.shape_cast %87 : vector<8xf32> to vector<8x1xf32>
    %cst_32 = arith.constant 0.001953125 : f32
    %89 = vector.broadcast %cst_32 : f32 to vector<8x1xf32>
    %90 = arith.mulf %88, %89 : vector<8x1xf32>
    %91 = arith.mulf %85, %85 : vector<8x1xf32>
    %92 = arith.subf %90, %91 : vector<8x1xf32>
    %cst_33 = arith.constant 9.99999974E-6 : f32
    %93 = vector.broadcast %cst_33 : f32 to vector<8x1xf32>
    %94 = arith.addf %92, %93 : vector<8x1xf32>
    %95 = math.rsqrt %94 : vector<8x1xf32>
    %96 = arith.mulf %15, %95 : vector<8x1xf32>
    %97 = arith.mulf %85, %96 : vector<8x1xf32>
    %98 = arith.subf %16, %97 : vector<8x1xf32>
    %99 = vector.broadcast %96 : vector<8x1xf32> to vector<8x512xf32>
    %100 = arith.mulf %81, %99 : vector<8x512xf32>
    %101 = vector.broadcast %98 : vector<8x1xf32> to vector<8x512xf32>
    %102 = arith.addf %100, %101 : vector<8x512xf32>
    %cst_34 = arith.constant 0.000000e+00 : f32
    %103 = vector.broadcast %cst_34 : f32 to vector<8x512xf32>
    %104 = arith.maximumf %102, %103 : vector<8x512xf32>
    %c0_35 = arith.constant 0 : index
    %c0_36 = arith.constant 0 : index
    %105 = vector.load %arg9[%c0_35, %c0_36] : memref<8x72xf32, #tpu.memory_space<vmem>>, vector<8x72xf32>
    %c17_i32_37 = arith.constant 17 : i32
    %106 = tpu.dynamic_rotate %104 by %c17_i32_37 dim 1 : vector<8x512xf32>, i32 -> vector<8x512xf32>
    %107 = vector.broadcast %1 : vector<1x512xf32> to vector<8x512xf32>
    %108 = arith.mulf %106, %107 : vector<8x512xf32>
    %c16_i32_38 = arith.constant 16 : i32
    %109 = tpu.dynamic_rotate %104 by %c16_i32_38 dim 1 : vector<8x512xf32>, i32 -> vector<8x512xf32>
    %110 = vector.broadcast %2 : vector<1x512xf32> to vector<8x512xf32>
    %111 = arith.mulf %109, %110 : vector<8x512xf32>
    %c15_i32_39 = arith.constant 15 : i32
    %112 = tpu.dynamic_rotate %104 by %c15_i32_39 dim 1 : vector<8x512xf32>, i32 -> vector<8x512xf32>
    %113 = vector.broadcast %3 : vector<1x512xf32> to vector<8x512xf32>
    %114 = arith.mulf %112, %113 : vector<8x512xf32>
    %c1_i32_40 = arith.constant 1 : i32
    %115 = tpu.dynamic_rotate %104 by %c1_i32_40 dim 1 : vector<8x512xf32>, i32 -> vector<8x512xf32>
    %116 = vector.broadcast %4 : vector<1x512xf32> to vector<8x512xf32>
    %117 = arith.mulf %115, %116 : vector<8x512xf32>
    %c511_i32_41 = arith.constant 511 : i32
    %118 = tpu.dynamic_rotate %104 by %c511_i32_41 dim 1 : vector<8x512xf32>, i32 -> vector<8x512xf32>
    %119 = vector.broadcast %5 : vector<1x512xf32> to vector<8x512xf32>
    %120 = arith.mulf %118, %119 : vector<8x512xf32>
    %c497_i32_42 = arith.constant 497 : i32
    %121 = tpu.dynamic_rotate %104 by %c497_i32_42 dim 1 : vector<8x512xf32>, i32 -> vector<8x512xf32>
    %122 = vector.broadcast %6 : vector<1x512xf32> to vector<8x512xf32>
    %123 = arith.mulf %121, %122 : vector<8x512xf32>
    %c496_i32_43 = arith.constant 496 : i32
    %124 = tpu.dynamic_rotate %104 by %c496_i32_43 dim 1 : vector<8x512xf32>, i32 -> vector<8x512xf32>
    %125 = vector.broadcast %7 : vector<1x512xf32> to vector<8x512xf32>
    %126 = arith.mulf %124, %125 : vector<8x512xf32>
    %c495_i32_44 = arith.constant 495 : i32
    %127 = tpu.dynamic_rotate %104 by %c495_i32_44 dim 1 : vector<8x512xf32>, i32 -> vector<8x512xf32>
    %128 = vector.broadcast %8 : vector<1x512xf32> to vector<8x512xf32>
    %129 = arith.mulf %127, %128 : vector<8x512xf32>
    %130 = tpu.concatenate %108, %111, %114, %117, %104, %120, %123, %126, %129 in 0 : vector<8x512xf32>, vector<8x512xf32>, vector<8x512xf32>, vector<8x512xf32>, vector<8x512xf32>, vector<8x512xf32>, vector<8x512xf32>, vector<8x512xf32>, vector<8x512xf32> -> vector<72x512xf32>
    %cst_45 = arith.constant dense<0.000000e+00> : vector<8x512xf32>
    %131 = tpu.matmul %105, %130, %cst_45 {dimension_numbers = #tpu.dot_dimension_numbers<[1], [0], [0], [1], [0, 0, 1, 1], [], []>} : vector<8x72xf32>, vector<72x512xf32>, vector<8x512xf32> -> vector<8x512xf32>
    %cst_46 = arith.constant dense<0.000000e+00> : vector<8xf32>
    %132 = vector.multi_reduction <add>, %131, %cst_46 [1] : vector<8x512xf32> to vector<8xf32>
    %133 = vector.shape_cast %132 : vector<8xf32> to vector<8x1xf32>
    %cst_47 = arith.constant 0.001953125 : f32
    %134 = vector.broadcast %cst_47 : f32 to vector<8x1xf32>
    %135 = arith.mulf %133, %134 : vector<8x1xf32>
    %136 = arith.mulf %131, %131 : vector<8x512xf32>
    %cst_48 = arith.constant dense<0.000000e+00> : vector<8xf32>
    %137 = vector.multi_reduction <add>, %136, %cst_48 [1] : vector<8x512xf32> to vector<8xf32>
    %138 = vector.shape_cast %137 : vector<8xf32> to vector<8x1xf32>
    %cst_49 = arith.constant 0.001953125 : f32
    %139 = vector.broadcast %cst_49 : f32 to vector<8x1xf32>
    %140 = arith.mulf %138, %139 : vector<8x1xf32>
    %141 = arith.mulf %135, %135 : vector<8x1xf32>
    %142 = arith.subf %140, %141 : vector<8x1xf32>
    %cst_50 = arith.constant 9.99999974E-6 : f32
    %143 = vector.broadcast %cst_50 : f32 to vector<8x1xf32>
    %144 = arith.addf %142, %143 : vector<8x1xf32>
    %145 = math.rsqrt %144 : vector<8x1xf32>
    %146 = arith.mulf %17, %145 : vector<8x1xf32>
    %147 = arith.mulf %135, %146 : vector<8x1xf32>
    %148 = arith.subf %18, %147 : vector<8x1xf32>
    %149 = vector.broadcast %146 : vector<8x1xf32> to vector<8x512xf32>
    %150 = arith.mulf %131, %149 : vector<8x512xf32>
    %151 = vector.broadcast %148 : vector<8x1xf32> to vector<8x512xf32>
    %152 = arith.addf %150, %151 : vector<8x512xf32>
    %cst_51 = arith.constant 0.000000e+00 : f32
    %153 = vector.broadcast %cst_51 : f32 to vector<8x512xf32>
    %154 = arith.maximumf %152, %153 : vector<8x512xf32>
    %c0_52 = arith.constant 0 : index
    %c0_53 = arith.constant 0 : index
    %155 = vector.load %arg10[%c0_52, %c0_53] : memref<8x512xf32, #tpu.memory_space<vmem>>, vector<8x512xf32>
    tpu.vector_store %arg10[%c0_52, %c0_53], %154 {strides = array<i32>} : memref<8x512xf32, #tpu.memory_space<vmem>>, vector<8x512xf32>,
    return
  }
}

</mosaic_0001>

<llo_original>
// kernel: up_forward.1
$region0: #{up_forward.1}
  #allocation0 [shape = 'u32[]', space=smem, size = 0x4, offset = 0x4, fixed_abs, tag = 'smem constant byte address 0x4 - core index']
  #allocation1 [shape = 'u32[72,128]{1,0:T(1,128)}', space=vmem, size = 0x9000, scoped, tag = 'internal scratch']
  %s0 = inlined_call_operand.vmem [shape: f32[8,128], index: 0, kind: input, shape index: {}]
  %s1 = inlined_call_operand.vmem [shape: f32[8,512], index: 1, kind: input, shape index: {}]
  %s2 = inlined_call_operand.vmem [shape: f32[8,2], index: 2, kind: input, shape index: {}]
  %s3 = inlined_call_operand.vmem [shape: f32[128,512], index: 3, kind: input, shape index: {}]
  %s4 = inlined_call_operand.vmem [shape: f32[9,512], index: 4, kind: input, shape index: {}]
  %s5 = inlined_call_operand.vmem [shape: f32[2,512], index: 5, kind: input, shape index: {}]
  %s6 = inlined_call_operand.vmem [shape: f32[8,16], index: 6, kind: input, shape index: {}]
  %s7 = inlined_call_operand.vmem [shape: f32[8,72], index: 7, kind: input, shape index: {}]
  %s8 = inlined_call_operand.vmem [shape: f32[8,72], index: 8, kind: input, shape index: {}]
  %s9 = inlined_call_operand.vmem [shape: f32[8,72], index: 9, kind: input, shape index: {}]
  %s10 = inlined_call_operand.vmem [shape: f32[8,512], index: 10, kind: output, shape index: {}]
  %s11 = sld [smem:[#allocation0]]
  $region50: #{up_forward.1} parent=0
    _
  %s13 = ssub.s32 1, %s11
  %s14 = scalar_select 0, %s13, %s11
  // Predicated region
  $region2: #{up_forward.1} parent=0 // pred_check
    _
  $region3: #{up_forward.1} parent=0 // pred_check_branch
    %16 = sbr.rel (0) target = $region5
  $region4: #{up_forward.1} parent=0 // pred_region
    _
  $region5: #{up_forward.1} parent=0 // pred_fallthru
    _
  // Predicated region
  $region6: #{up_forward.1} parent=0 // pred_check
    _
  $region7: #{up_forward.1} parent=0 // pred_check_branch
    %18 = sbr.rel (0) target = $region9
  $region8: #{up_forward.1} parent=0 // pred_region
    _
  $region9: #{up_forward.1} parent=0 // pred_fallthru
    _
  // Predicated region
  $region10: #{up_forward.1} parent=0 // pred_check
    _
  $region11: #{up_forward.1} parent=0 // pred_check_branch
    %20 = sbr.rel (0) target = $region13
  $region12: #{up_forward.1} parent=0 // pred_region
    _
  $region13: #{up_forward.1} parent=0 // pred_fallthru
    _
  // Predicated region
  $region14: #{up_forward.1} parent=0 // pred_check
    _
  $region15: #{up_forward.1} parent=0 // pred_check_branch
    %22 = sbr.rel (0) target = $region17
  $region16: #{up_forward.1} parent=0 // pred_region
    _
  $region17: #{up_forward.1} parent=0 // pred_fallthru
    _
  // Predicated region
  $region18: #{up_forward.1} parent=0 // pred_check
    _
  $region19: #{up_forward.1} parent=0 // pred_check_branch
    %24 = sbr.rel (0) target = $region21
  $region20: #{up_forward.1} parent=0 // pred_region
    _
  $region21: #{up_forward.1} parent=0 // pred_fallthru
    _
  // Predicated region
  $region22: #{up_forward.1} parent=0 // pred_check
    _
  $region23: #{up_forward.1} parent=0 // pred_check_branch
    %26 = sbr.rel (0) target = $region25
  $region24: #{up_forward.1} parent=0 // pred_region
    _
  $region25: #{up_forward.1} parent=0 // pred_fallthru
    _
  // Predicated region
  $region26: #{up_forward.1} parent=0 // pred_check
    _
  $region27: #{up_forward.1} parent=0 // pred_check_branch
    %28 = sbr.rel (0) target = $region29
  $region28: #{up_forward.1} parent=0 // pred_region
    _
  $region29: #{up_forward.1} parent=0 // pred_fallthru
    _
  // Predicated region
  $region30: #{up_forward.1} parent=0 // pred_check
    _
  $region31: #{up_forward.1} parent=0 // pred_check_branch
    %30 = sbr.rel (0) target = $region33
  $region32: #{up_forward.1} parent=0 // pred_region
    _
  $region33: #{up_forward.1} parent=0 // pred_fallthru
    _
  // Predicated region
  $region34: #{up_forward.1} parent=0 // pred_check
    _
  $region35: #{up_forward.1} parent=0 // pred_check_branch
    %32 = sbr.rel (0) target = $region37
  $region36: #{up_forward.1} parent=0 // pred_region
    _
  $region37: #{up_forward.1} parent=0 // pred_fallthru
    _
  // Predicated region
  $region38: #{up_forward.1} parent=0 // pred_check
    _
  $region39: #{up_forward.1} parent=0 // pred_check_branch
    %34 = sbr.rel (0) target = $region41
  $region40: #{up_forward.1} parent=0 // pred_region
    _
  $region41: #{up_forward.1} parent=0 // pred_fallthru
    _
  %v35 = vld [vmem:[%s4] sm:$0xff]
  %v36 = vld [vmem:[%s4 + $0x8] sm:$0xff]
  %v37 = vld [vmem:[%s4 + $0x10] sm:$0xff]
  %v38 = vld [vmem:[%s4 + $0x18] sm:$0xff]
  %v39 = vld [vmem:[%s4 + $0x20] sm:$0x1]
  %v40 = vld [vmem:[%s4 + $0x28] sm:$0x1]
  %v41 = vld [vmem:[%s4 + $0x30] sm:$0x1]
  %v42 = vld [vmem:[%s4 + $0x38] sm:$0x1]
  %v43 = vld [vmem:[%s0] sm:$0xff]
  %v44 = vld [vmem:[%s3] sm:$0xff]
  %v45 = vld [vmem:[%s3 + $0x8] sm:$0xff]
  %v46 = vld [vmem:[%s3 + $0x10] sm:$0xff]
  %v47 = vld [vmem:[%s3 + $0x18] sm:$0xff]
  %v48 = vld [vmem:[%s3 + $0x20] sm:$0xff]
  %v49 = vld [vmem:[%s3 + $0x28] sm:$0xff]
  %v50 = vld [vmem:[%s3 + $0x30] sm:$0xff]
  %v51 = vld [vmem:[%s3 + $0x38] sm:$0xff]
  %v52 = vld [vmem:[%s3 + $0x40] sm:$0xff]
  %v53 = vld [vmem:[%s3 + $0x48] sm:$0xff]
  %v54 = vld [vmem:[%s3 + $0x50] sm:$0xff]
  %v55 = vld [vmem:[%s3 + $0x58] sm:$0xff]
  %v56 = vld [vmem:[%s3 + $0x60] sm:$0xff]
  %v57 = vld [vmem:[%s3 + $0x68] sm:$0xff]
  %v58 = vld [vmem:[%s3 + $0x70] sm:$0xff]
  %v59 = vld [vmem:[%s3 + $0x78] sm:$0xff]
  %v60 = vld [vmem:[%s3 + $0x80] sm:$0xff]
  %v61 = vld [vmem:[%s3 + $0x88] sm:$0xff]
  %v62 = vld [vmem:[%s3 + $0x90] sm:$0xff]
  %v63 = vld [vmem:[%s3 + $0x98] sm:$0xff]
  %v64 = vld [vmem:[%s3 + $0xa0] sm:$0xff]
  %v65 = vld [vmem:[%s3 + $0xa8] sm:$0xff]
  %v66 = vld [vmem:[%s3 + $0xb0] sm:$0xff]
  %v67 = vld [vmem:[%s3 + $0xb8] sm:$0xff]
  %v68 = vld [vmem:[%s3 + $0xc0] sm:$0xff]
  %v69 = vld [vmem:[%s3 + $0xc8] sm:$0xff]
  %v70 = vld [vmem:[%s3 + $0xd0] sm:$0xff]
  %v71 = vld [vmem:[%s3 + $0xd8] sm:$0xff]
  %v72 = vld [vmem:[%s3 + $0xe0] sm:$0xff]
  %v73 = vld [vmem:[%s3 + $0xe8] sm:$0xff]
  %v74 = vld [vmem:[%s3 + $0xf0] sm:$0xff]
  %v75 = vld [vmem:[%s3 + $0xf8] sm:$0xff]
  %v76 = vld [vmem:[%s3 + $0x100] sm:$0xff]
  %v77 = vld [vmem:[%s3 + $0x108] sm:$0xff]
  %v78 = vld [vmem:[%s3 + $0x110] sm:$0xff]
  %v79 = vld [vmem:[%s3 + $0x118] sm:$0xff]
  %v80 = vld [vmem:[%s3 + $0x120] sm:$0xff]
  %v81 = vld [vmem:[%s3 + $0x128] sm:$0xff]
  %v82 = vld [vmem:[%s3 + $0x130] sm:$0xff]
  %v83 = vld [vmem:[%s3 + $0x138] sm:$0xff]
  %v84 = vld [vmem:[%s3 + $0x140] sm:$0xff]
  %v85 = vld [vmem:[%s3 + $0x148] sm:$0xff]
  %v86 = vld [vmem:[%s3 + $0x150] sm:$0xff]
  %v87 = vld [vmem:[%s3 + $0x158] sm:$0xff]
  %v88 = vld [vmem:[%s3 + $0x160] sm:$0xff]
  %v89 = vld [vmem:[%s3 + $0x168] sm:$0xff]
  %v90 = vld [vmem:[%s3 + $0x170] sm:$0xff]
  %v91 = vld [vmem:[%s3 + $0x178] sm:$0xff]
  %v92 = vld [vmem:[%s3 + $0x180] sm:$0xff]
  %v93 = vld [vmem:[%s3 + $0x188] sm:$0xff]
  %v94 = vld [vmem:[%s3 + $0x190] sm:$0xff]
  %v95 = vld [vmem:[%s3 + $0x198] sm:$0xff]
  %v96 = vld [vmem:[%s3 + $0x1a0] sm:$0xff]
  %v97 = vld [vmem:[%s3 + $0x1a8] sm:$0xff]
  %v98 = vld [vmem:[%s3 + $0x1b0] sm:$0xff]
  %v99 = vld [vmem:[%s3 + $0x1b8] sm:$0xff]
  %v100 = vld [vmem:[%s3 + $0x1c0] sm:$0xff]
  %v101 = vld [vmem:[%s3 + $0x1c8] sm:$0xff]
  %v102 = vld [vmem:[%s3 + $0x1d0] sm:$0xff]
  %v103 = vld [vmem:[%s3 + $0x1d8] sm:$0xff]
  %v104 = vld [vmem:[%s3 + $0x1e0] sm:$0xff]
  %v105 = vld [vmem:[%s3 + $0x1e8] sm:$0xff]
  %v106 = vld [vmem:[%s3 + $0x1f0] sm:$0xff]
  %v107 = vld [vmem:[%s3 + $0x1f8] sm:$0xff]
  %v108 = vld [vmem:[%s6] sm:$0xff]
  %v109 = vld [vmem:[%s2] sm:$0xff]
  %111 = vset.pattern.permute.xlu0 8
  %112 = vperm.xlu0 %111, %v108
  %v113 = vpop.permute.xlu0 %112
  %vm115 = vcmask 64512
  %v116 = vsel %vm115, %v108, 0
  %118 = vmatpush.msra.mxu0 0.0
  %119 = vmatpush.msra.mxu0 0.0
  %120 = vmatpush.msra.mxu0 0.0
  %121 = vmatpush.msra.mxu0 0.0
  %122 = vmatpush.msra.mxu0 0.0
  %123 = vmatpush.msra.mxu0 0.0
  %124 = vmatpush.msra.mxu0 0.0
  %125 = vmatpush.msra.mxu0 0.0
  %126 = vmatpush.msra.mxu0 0.0
  %127 = vmatpush.msra.mxu0 0.0
  %128 = vmatpush.msra.mxu0 0.0
  %129 = vmatpush.msra.mxu0 0.0
  %130 = vmatpush.msra.mxu0 0.0
  %131 = vmatpush.msra.mxu0 0.0
  %132 = vmatpush.msra.mxu0 0.0
  %133 = vmatpush.msra.mxu0 %v109
  %134 = vmatmul.f32.gmra.mxu0 %v116
  %v135 = vpop.f32.mrf.mxu0
  %v136 = vadd.f32 %v113, %v135
  %137 = vdwg.mxu0
  %v138 = vld [vmem:[%s5] sm:$0xff]
  %140 = vst [vmem:[#allocation1] ss:$4 sm:$0xff] %v138
  %v141 = vld.sshfl [vmem:[#allocation1] sm:$0xff pattern:$0x73625140]
  %v142 = vld.sshfl [vmem:[#allocation1 + $0x8] sm:$0xff pattern:$0x73625140]
  %v143 = vld.sshfl [vmem:[#allocation1 + $0x10] sm:$0xff pattern:$0x73625140]
  %v144 = vld.sshfl [vmem:[#allocation1 + $0x18] sm:$0xff pattern:$0x73625140]
  %vm145 = vcmask 15360
  %v147 = vsel %vm145, %v136, 0
  %vm149 = vcmask 1041408
  %v150 = vsel %vm149, %v141, 0
  %v152 = vsel %vm149, %v142, 0
  %v154 = vsel %vm149, %v143, 0
  %v156 = vsel %vm149, %v144, 0
  %158 = vmatpush.msra.mxu0 0.0
  %159 = vmatpush.msra.mxu0 0.0
  %160 = vmatpush.msra.mxu0 0.0
  %161 = vmatpush.msra.mxu0 0.0
  %162 = vmatpush.msra.mxu0 0.0
  %163 = vmatpush.msra.mxu0 0.0
  %164 = vmatpush.msra.mxu0 0.0
  %165 = vmatpush.msra.mxu0 0.0
  %166 = vmatpush.msra.mxu0 0.0
  %167 = vmatpush.msra.mxu0 0.0
  %168 = vmatpush.msra.mxu0 0.0
  %169 = vmatpush.msra.mxu0 0.0
  %170 = vmatpush.msra.mxu0 0.0
  %171 = vmatpush.msra.mxu0 0.0
  %172 = vmatpush.msra.mxu0 0.0
  %173 = vmatpush.msra.mxu0 %v150
  %174 = vmatmul.f32.gmra.mxu0 %v147
  %v175 = vpop.f32.mrf.mxu0
  %v176 = vadd.f32 0.0, %v175
  %177 = vdwg.mxu0
  %178 = vmatpush.msra.mxu0 0.0
  %179 = vmatpush.msra.mxu0 0.0
  %180 = vmatpush.msra.mxu0 0.0
  %181 = vmatpush.msra.mxu0 0.0
  %182 = vmatpush.msra.mxu0 0.0
  %183 = vmatpush.msra.mxu0 0.0
  %184 = vmatpush.msra.mxu0 0.0
  %185 = vmatpush.msra.mxu0 0.0
  %186 = vmatpush.msra.mxu0 0.0
  %187 = vmatpush.msra.mxu0 0.0
  %188 = vmatpush.msra.mxu0 0.0
  %189 = vmatpush.msra.mxu0 0.0
  %190 = vmatpush.msra.mxu0 0.0
  %191 = vmatpush.msra.mxu0 0.0
  %192 = vmatpush.msra.mxu0 0.0
  %193 = vmatpush.msra.mxu0 %v152
  %194 = vmatmul.f32.gmra.mxu0 %v147
  %v195 = vpop.f32.mrf.mxu0
  %v196 = vadd.f32 0.0, %v195
  %197 = vdwg.mxu0
  %198 = vmatpush.msra.mxu0 0.0
  %199 = vmatpush.msra.mxu0 0.0
  %200 = vmatpush.msra.mxu0 0.0
  %201 = vmatpush.msra.mxu0 0.0
  %202 = vmatpush.msra.mxu0 0.0
  %203 = vmatpush.msra.mxu0 0.0
  %204 = vmatpush.msra.mxu0 0.0
  %205 = vmatpush.msra.mxu0 0.0
  %206 = vmatpush.msra.mxu0 0.0
  %207 = vmatpush.msra.mxu0 0.0
  %208 = vmatpush.msra.mxu0 0.0
  %209 = vmatpush.msra.mxu0 0.0
  %210 = vmatpush.msra.mxu0 0.0
  %211 = vmatpush.msra.mxu0 0.0
  %212 = vmatpush.msra.mxu0 0.0
  %213 = vmatpush.msra.mxu0 %v154
  %214 = vmatmul.f32.gmra.mxu0 %v147
  %v215 = vpop.f32.mrf.mxu0
  %v216 = vadd.f32 0.0, %v215
  %217 = vdwg.mxu0
  %218 = vmatpush.msra.mxu0 0.0
  %219 = vmatpush.msra.mxu0 0.0
  %220 = vmatpush.msra.mxu0 0.0
  %221 = vmatpush.msra.mxu0 0.0
  %222 = vmatpush.msra.mxu0 0.0
  %223 = vmatpush.msra.mxu0 0.0
  %224 = vmatpush.msra.mxu0 0.0
  %225 = vmatpush.msra.mxu0 0.0
  %226 = vmatpush.msra.mxu0 0.0
  %227 = vmatpush.msra.mxu0 0.0
  %228 = vmatpush.msra.mxu0 0.0
  %229 = vmatpush.msra.mxu0 0.0
  %230 = vmatpush.msra.mxu0 0.0
  %231 = vmatpush.msra.mxu0 0.0
  %232 = vmatpush.msra.mxu0 0.0
  %233 = vmatpush.msra.mxu0 %v156
  %234 = vmatmul.f32.gmra.mxu0 %v147
  %v235 = vpop.f32.mrf.mxu0
  %v236 = vadd.f32 0.0, %v235
  %237 = vdwg.mxu0
  %238 = vmatpush.msra.mxu0 %v104
  %239 = vmatpush.msra.mxu0 %v100
  %240 = vmatpush.msra.mxu0 %v96
  %241 = vmatpush.msra.mxu0 %v92
  %242 = vmatpush.msra.mxu0 %v88
  %243 = vmatpush.msra.mxu0 %v84
  %244 = vmatpush.msra.mxu0 %v80
  %245 = vmatpush.msra.mxu0 %v76
  %246 = vmatpush.msra.mxu0 %v72
  %247 = vmatpush.msra.mxu0 %v68
  %248 = vmatpush.msra.mxu0 %v64
  %249 = vmatpush.msra.mxu0 %v60
  %250 = vmatpush.msra.mxu0 %v56
  %251 = vmatpush.msra.mxu0 %v52
  %252 = vmatpush.msra.mxu0 %v48
  %253 = vmatpush.msra.mxu0 %v44
  %254 = vmatmul.f32.gmra.mxu0 %v43
  %v255 = vpop.f32.mrf.mxu0
  %v256 = vadd.f32 %v176, %v255
  %257 = vdwg.mxu0
  %258 = vmatpush.msra.mxu0 %v105
  %259 = vmatpush.msra.mxu0 %v101
  %260 = vmatpush.msra.mxu0 %v97
  %261 = vmatpush.msra.mxu0 %v93
  %262 = vmatpush.msra.mxu0 %v89
  %263 = vmatpush.msra.mxu0 %v85
  %264 = vmatpush.msra.mxu0 %v81
  %265 = vmatpush.msra.mxu0 %v77
  %266 = vmatpush.msra.mxu0 %v73
  %267 = vmatpush.msra.mxu0 %v69
  %268 = vmatpush.msra.mxu0 %v65
  %269 = vmatpush.msra.mxu0 %v61
  %270 = vmatpush.msra.mxu0 %v57
  %271 = vmatpush.msra.mxu0 %v53
  %272 = vmatpush.msra.mxu0 %v49
  %273 = vmatpush.msra.mxu0 %v45
  %274 = vmatmul.f32.gmra.mxu0 %v43
  %v275 = vpop.f32.mrf.mxu0
  %v276 = vadd.f32 %v196, %v275
  %277 = vdwg.mxu0
  %278 = vmatpush.msra.mxu0 %v106
  %279 = vmatpush.msra.mxu0 %v102
  %280 = vmatpush.msra.mxu0 %v98
  %281 = vmatpush.msra.mxu0 %v94
  %282 = vmatpush.msra.mxu0 %v90
  %283 = vmatpush.msra.mxu0 %v86
  %284 = vmatpush.msra.mxu0 %v82
  %285 = vmatpush.msra.mxu0 %v78
  %286 = vmatpush.msra.mxu0 %v74
  %287 = vmatpush.msra.mxu0 %v70
  %288 = vmatpush.msra.mxu0 %v66
  %289 = vmatpush.msra.mxu0 %v62
  %290 = vmatpush.msra.mxu0 %v58
  %291 = vmatpush.msra.mxu0 %v54
  %292 = vmatpush.msra.mxu0 %v50
  %293 = vmatpush.msra.mxu0 %v46
  %294 = vmatmul.f32.gmra.mxu0 %v43
  %v295 = vpop.f32.mrf.mxu0
  %v296 = vadd.f32 %v216, %v295
  %297 = vdwg.mxu0
  %298 = vmatpush.msra.mxu0 %v107
  %299 = vmatpush.msra.mxu0 %v103
  %300 = vmatpush.msra.mxu0 %v99
  %301 = vmatpush.msra.mxu0 %v95
  %302 = vmatpush.msra.mxu0 %v91
  %303 = vmatpush.msra.mxu0 %v87
  %304 = vmatpush.msra.mxu0 %v83
  %305 = vmatpush.msra.mxu0 %v79
  %306 = vmatpush.msra.mxu0 %v75
  %307 = vmatpush.msra.mxu0 %v71
  %308 = vmatpush.msra.mxu0 %v67
  %309 = vmatpush.msra.mxu0 %v63
  %310 = vmatpush.msra.mxu0 %v59
  %311 = vmatpush.msra.mxu0 %v55
  %312 = vmatpush.msra.mxu0 %v51
  %313 = vmatpush.msra.mxu0 %v47
  %314 = vmatmul.f32.gmra.mxu0 %v43
  %v315 = vpop.f32.mrf.mxu0
  %v316 = vadd.f32 %v236, %v315
  %317 = vdwg.mxu0
  %v318 = vld [vmem:[%s7] sm:$0xff]
  %v319 = vld [vmem:[%s1] sm:$0xff]
  %v320 = vld [vmem:[%s1 + $0x8] sm:$0xff]
  %v321 = vld [vmem:[%s1 + $0x10] sm:$0xff]
  %v322 = vld [vmem:[%s1 + $0x18] sm:$0xff]
  %323 = vrot.lane.b32.xlu0 %v319, 17
  %v324 = vpop.permute.xlu0 %323
  %325 = vrot.lane.b32.xlu0 %v320, 17
  %v326 = vpop.permute.xlu0 %325
  %327 = vrot.lane.b32.xlu0 %v321, 17
  %v328 = vpop.permute.xlu0 %327
  %329 = vrot.lane.b32.xlu0 %v322, 17
  %v330 = vpop.permute.xlu0 %329
  %v331 = vlaneseq
  %v332 = vand.u32 %v331, 127
  %vm333 = vcmp.lt.s32.totalorder %v332, 17
  %v334 = vsel %vm333, %v328, %v330
  %v335 = vsel %vm333, %v326, %v328
  %v336 = vsel %vm333, %v324, %v326
  %v337 = vsel %vm333, %v330, %v324
  %v338 = vperm.slane %v35, 0
  %v339 = vperm.slane %v36, 0
  %v340 = vperm.slane %v37, 0
  %v341 = vperm.slane %v38, 0
  %v342 = vmul.f32 %v337, %v338
  %v343 = vmul.f32 %v336, %v339
  %v344 = vmul.f32 %v335, %v340
  %v345 = vmul.f32 %v334, %v341
  %346 = vrot.lane.b32.xlu0 %v319, 16
  %v347 = vpop.permute.xlu0 %346
  %348 = vrot.lane.b32.xlu0 %v320, 16
  %v349 = vpop.permute.xlu0 %348
  %350 = vrot.lane.b32.xlu0 %v321, 16
  %v351 = vpop.permute.xlu0 %350
  %352 = vrot.lane.b32.xlu0 %v322, 16
  %v353 = vpop.permute.xlu0 %352
  %vm354 = vcmp.lt.s32.totalorder %v332, 16
  %v355 = vsel %vm354, %v351, %v353
  %v356 = vsel %vm354, %v349, %v351
  %v357 = vsel %vm354, %v347, %v349
  %v358 = vsel %vm354, %v353, %v347
  %v359 = vperm.slane %v35, 1
  %v360 = vperm.slane %v36, 1
  %v361 = vperm.slane %v37, 1
  %v362 = vperm.slane %v38, 1
  %v363 = vmul.f32 %v358, %v359
  %v364 = vmul.f32 %v357, %v360
  %v365 = vmul.f32 %v356, %v361
  %v366 = vmul.f32 %v355, %v362
  %367 = vrot.lane.b32.xlu0 %v319, 15
  %v368 = vpop.permute.xlu0 %367
  %369 = vrot.lane.b32.xlu0 %v320, 15
  %v370 = vpop.permute.xlu0 %369
  %371 = vrot.lane.b32.xlu0 %v321, 15
  %v372 = vpop.permute.xlu0 %371
  %373 = vrot.lane.b32.xlu0 %v322, 15
  %v374 = vpop.permute.xlu0 %373
  %vm375 = vcmp.lt.s32.totalorder %v332, 15
  %v376 = vsel %vm375, %v372, %v374
  %v377 = vsel %vm375, %v370, %v372
  %v378 = vsel %vm375, %v368, %v370
  %v379 = vsel %vm375, %v374, %v368
  %v380 = vperm.slane %v35, 2
  %v381 = vperm.slane %v36, 2
  %v382 = vperm.slane %v37, 2
  %v383 = vperm.slane %v38, 2
  %v384 = vmul.f32 %v379, %v380
  %v385 = vmul.f32 %v378, %v381
  %v386 = vmul.f32 %v377, %v382
  %v387 = vmul.f32 %v376, %v383
  %388 = vrot.lane.b32.xlu0 %v319, 1
  %v389 = vpop.permute.xlu0 %388
  %390 = vrot.lane.b32.xlu0 %v320, 1
  %v391 = vpop.permute.xlu0 %390
  %392 = vrot.lane.b32.xlu0 %v321, 1
  %v393 = vpop.permute.xlu0 %392
  %394 = vrot.lane.b32.xlu0 %v322, 1
  %v395 = vpop.permute.xlu0 %394
  %vm396 = vcmp.lt.s32.totalorder %v332, 1
  %v397 = vsel %vm396, %v393, %v395
  %v398 = vsel %vm396, %v391, %v393
  %v399 = vsel %vm396, %v389, %v391
  %v400 = vsel %vm396, %v395, %v389
  %v401 = vperm.slane %v35, 3
  %v402 = vperm.slane %v36, 3
  %v403 = vperm.slane %v37, 3
  %v404 = vperm.slane %v38, 3
  %v405 = vmul.f32 %v400, %v401
  %v406 = vmul.f32 %v399, %v402
  %v407 = vmul.f32 %v398, %v403
  %v408 = vmul.f32 %v397, %v404
  %409 = vrot.lane.b32.xlu0 %v319, 127
  %v410 = vpop.permute.xlu0 %409
  %411 = vrot.lane.b32.xlu0 %v320, 127
  %v412 = vpop.permute.xlu0 %411
  %413 = vrot.lane.b32.xlu0 %v321, 127
  %v414 = vpop.permute.xlu0 %413
  %415 = vrot.lane.b32.xlu0 %v322, 127
  %v416 = vpop.permute.xlu0 %415
  %vm417 = vcmp.lt.s32.totalorder %v332, 127
  %v418 = vsel %vm417, %v414, %v416
  %v419 = vsel %vm417, %v412, %v414
  %v420 = vsel %vm417, %v410, %v412
  %v421 = vsel %vm417, %v416, %v410
  %v422 = vperm.slane %v35, 5
  %v423 = vperm.slane %v36, 5
  %v424 = vperm.slane %v37, 5
  %v425 = vperm.slane %v38, 5
  %v426 = vmul.f32 %v420, %v422
  %v427 = vmul.f32 %v419, %v423
  %v428 = vmul.f32 %v418, %v424
  %v429 = vmul.f32 %v421, %v425
  %430 = vrot.lane.b32.xlu0 %v319, 113
  %v431 = vpop.permute.xlu0 %430
  %432 = vrot.lane.b32.xlu0 %v320, 113
  %v433 = vpop.permute.xlu0 %432
  %434 = vrot.lane.b32.xlu0 %v321, 113
  %v435 = vpop.permute.xlu0 %434
  %436 = vrot.lane.b32.xlu0 %v322, 113
  %v437 = vpop.permute.xlu0 %436
  %vm438 = vcmp.lt.s32.totalorder %v332, 113
  %v439 = vsel %vm438, %v435, %v437
  %v440 = vsel %vm438, %v433, %v435
  %v441 = vsel %vm438, %v431, %v433
  %v442 = vsel %vm438, %v437, %v431
  %v443 = vperm.slane %v35, 6
  %v444 = vperm.slane %v36, 6
  %v445 = vperm.slane %v37, 6
  %v446 = vperm.slane %v38, 6
  %v447 = vmul.f32 %v441, %v443
  %v448 = vmul.f32 %v440, %v444
  %v449 = vmul.f32 %v439, %v445
  %v450 = vmul.f32 %v442, %v446
  %451 = vrot.lane.b32.xlu0 %v319, 112
  %v452 = vpop.permute.xlu0 %451
  %453 = vrot.lane.b32.xlu0 %v320, 112
  %v454 = vpop.permute.xlu0 %453
  %455 = vrot.lane.b32.xlu0 %v321, 112
  %v456 = vpop.permute.xlu0 %455
  %457 = vrot.lane.b32.xlu0 %v322, 112
  %v458 = vpop.permute.xlu0 %457
  %vm459 = vcmp.lt.s32.totalorder %v332, 112
  %v460 = vsel %vm459, %v456, %v458
  %v461 = vsel %vm459, %v454, %v456
  %v462 = vsel %vm459, %v452, %v454
  %v463 = vsel %vm459, %v458, %v452
  %v464 = vperm.slane %v35, 7
  %v465 = vperm.slane %v36, 7
  %v466 = vperm.slane %v37, 7
  %v467 = vperm.slane %v38, 7
  %v468 = vmul.f32 %v462, %v464
  %v469 = vmul.f32 %v461, %v465
  %v470 = vmul.f32 %v460, %v466
  %v471 = vmul.f32 %v463, %v467
  %472 = vrot.lane.b32.xlu0 %v319, 111
  %v473 = vpop.permute.xlu0 %472
  %474 = vrot.lane.b32.xlu0 %v320, 111
  %v475 = vpop.permute.xlu0 %474
  %476 = vrot.lane.b32.xlu0 %v321, 111
  %v477 = vpop.permute.xlu0 %476
  %478 = vrot.lane.b32.xlu0 %v322, 111
  %v479 = vpop.permute.xlu0 %478
  %vm480 = vcmp.lt.s32.totalorder %v332, 111
  %v481 = vsel %vm480, %v477, %v479
  %v482 = vsel %vm480, %v475, %v477
  %v483 = vsel %vm480, %v473, %v475
  %v484 = vsel %vm480, %v479, %v473
  %v485 = vperm.slane %v39, 0
  %v486 = vperm.slane %v40, 0
  %v487 = vperm.slane %v41, 0
  %v488 = vperm.slane %v42, 0
  %v489 = vmul.f32 %v483, %v485
  %v490 = vmul.f32 %v482, %v486
  %v491 = vmul.f32 %v481, %v487
  %v492 = vmul.f32 %v484, %v488
  %v493 = vld [vmem:[%s8] sm:$0xff]
  %494 = vrot.lane.b32.xlu0 %v256, 17
  %v495 = vpop.permute.xlu0 %494
  %496 = vrot.lane.b32.xlu0 %v276, 17
  %v497 = vpop.permute.xlu0 %496
  %498 = vrot.lane.b32.xlu0 %v296, 17
  %v499 = vpop.permute.xlu0 %498
  %500 = vrot.lane.b32.xlu0 %v316, 17
  %v501 = vpop.permute.xlu0 %500
  %v502 = vsel %vm333, %v499, %v501
  %v503 = vsel %vm333, %v497, %v499
  %v504 = vsel %vm333, %v495, %v497
  %v505 = vsel %vm333, %v501, %v495
  %v506 = vmul.f32 %v505, %v338
  %v507 = vmul.f32 %v504, %v339
  %v508 = vmul.f32 %v503, %v340
  %v509 = vmul.f32 %v502, %v341
  %510 = vrot.lane.b32.xlu0 %v256, 16
  %v511 = vpop.permute.xlu0 %510
  %512 = vrot.lane.b32.xlu0 %v276, 16
  %v513 = vpop.permute.xlu0 %512
  %514 = vrot.lane.b32.xlu0 %v296, 16
  %v515 = vpop.permute.xlu0 %514
  %516 = vrot.lane.b32.xlu0 %v316, 16
  %v517 = vpop.permute.xlu0 %516
  %v518 = vsel %vm354, %v515, %v517
  %v519 = vsel %vm354, %v513, %v515
  %v520 = vsel %vm354, %v511, %v513
  %v521 = vsel %vm354, %v517, %v511
  %v522 = vmul.f32 %v521, %v359
  %v523 = vmul.f32 %v520, %v360
  %v524 = vmul.f32 %v519, %v361
  %v525 = vmul.f32 %v518, %v362
  %526 = vrot.lane.b32.xlu0 %v256, 15
  %v527 = vpop.permute.xlu0 %526
  %528 = vrot.lane.b32.xlu0 %v276, 15
  %v529 = vpop.permute.xlu0 %528
  %530 = vrot.lane.b32.xlu0 %v296, 15
  %v531 = vpop.permute.xlu0 %530
  %532 = vrot.lane.b32.xlu0 %v316, 15
  %v533 = vpop.permute.xlu0 %532
  %v534 = vsel %vm375, %v531, %v533
  %v535 = vsel %vm375, %v529, %v531
  %v536 = vsel %vm375, %v527, %v529
  %v537 = vsel %vm375, %v533, %v527
  %v538 = vmul.f32 %v537, %v380
  %v539 = vmul.f32 %v536, %v381
  %v540 = vmul.f32 %v535, %v382
  %v541 = vmul.f32 %v534, %v383
  %542 = vrot.lane.b32.xlu0 %v256, 1
  %v543 = vpop.permute.xlu0 %542
  %544 = vrot.lane.b32.xlu0 %v276, 1
  %v545 = vpop.permute.xlu0 %544
  %546 = vrot.lane.b32.xlu0 %v296, 1
  %v547 = vpop.permute.xlu0 %546
  %548 = vrot.lane.b32.xlu0 %v316, 1
  %v549 = vpop.permute.xlu0 %548
  %v550 = vsel %vm396, %v547, %v549
  %v551 = vsel %vm396, %v545, %v547
  %v552 = vsel %vm396, %v543, %v545
  %v553 = vsel %vm396, %v549, %v543
  %v554 = vmul.f32 %v553, %v401
  %v555 = vmul.f32 %v552, %v402
  %v556 = vmul.f32 %v551, %v403
  %v557 = vmul.f32 %v550, %v404
  %558 = vrot.lane.b32.xlu0 %v256, 127
  %v559 = vpop.permute.xlu0 %558
  %560 = vrot.lane.b32.xlu0 %v276, 127
  %v561 = vpop.permute.xlu0 %560
  %562 = vrot.lane.b32.xlu0 %v296, 127
  %v563 = vpop.permute.xlu0 %562
  %564 = vrot.lane.b32.xlu0 %v316, 127
  %v565 = vpop.permute.xlu0 %564
  %v566 = vsel %vm417, %v563, %v565
  %v567 = vsel %vm417, %v561, %v563
  %v568 = vsel %vm417, %v559, %v561
  %v569 = vsel %vm417, %v565, %v559
  %v570 = vmul.f32 %v568, %v422
  %v571 = vmul.f32 %v567, %v423
  %v572 = vmul.f32 %v566, %v424
  %v573 = vmul.f32 %v569, %v425
  %574 = vrot.lane.b32.xlu0 %v256, 113
  %v575 = vpop.permute.xlu0 %574
  %576 = vrot.lane.b32.xlu0 %v276, 113
  %v577 = vpop.permute.xlu0 %576
  %578 = vrot.lane.b32.xlu0 %v296, 113
  %v579 = vpop.permute.xlu0 %578
  %580 = vrot.lane.b32.xlu0 %v316, 113
  %v581 = vpop.permute.xlu0 %580
  %v582 = vsel %vm438, %v579, %v581
  %v583 = vsel %vm438, %v577, %v579
  %v584 = vsel %vm438, %v575, %v577
  %v585 = vsel %vm438, %v581, %v575
  %v586 = vmul.f32 %v584, %v443
  %v587 = vmul.f32 %v583, %v444
  %v588 = vmul.f32 %v582, %v445
  %v589 = vmul.f32 %v585, %v446
  %590 = vrot.lane.b32.xlu0 %v256, 112
  %v591 = vpop.permute.xlu0 %590
  %592 = vrot.lane.b32.xlu0 %v276, 112
  %v593 = vpop.permute.xlu0 %592
  %594 = vrot.lane.b32.xlu0 %v296, 112
  %v595 = vpop.permute.xlu0 %594
  %596 = vrot.lane.b32.xlu0 %v316, 112
  %v597 = vpop.permute.xlu0 %596
  %v598 = vsel %vm459, %v595, %v597
  %v599 = vsel %vm459, %v593, %v595
  %v600 = vsel %vm459, %v591, %v593
  %v601 = vsel %vm459, %v597, %v591
  %v602 = vmul.f32 %v600, %v464
  %v603 = vmul.f32 %v599, %v465
  %v604 = vmul.f32 %v598, %v466
  %v605 = vmul.f32 %v601, %v467
  %606 = vrot.lane.b32.xlu0 %v256, 111
  %v607 = vpop.permute.xlu0 %606
  %608 = vrot.lane.b32.xlu0 %v276, 111
  %v609 = vpop.permute.xlu0 %608
  %610 = vrot.lane.b32.xlu0 %v296, 111
  %v611 = vpop.permute.xlu0 %610
  %612 = vrot.lane.b32.xlu0 %v316, 111
  %v613 = vpop.permute.xlu0 %612
  %v614 = vsel %vm480, %v611, %v613
  %v615 = vsel %vm480, %v609, %v611
  %v616 = vsel %vm480, %v607, %v609
  %v617 = vsel %vm480, %v613, %v607
  %v618 = vmul.f32 %v616, %v485
  %v619 = vmul.f32 %v615, %v486
  %v620 = vmul.f32 %v614, %v487
  %v621 = vmul.f32 %v617, %v488
  %vm622 = vcmask 588800
  %v624 = vsel %vm622, %v493, 0
  %626 = vmatpush.msra.mxu0 0.0
  %627 = vmatpush.msra.mxu0 0.0
  %628 = vmatpush.msra.mxu0 0.0
  %629 = vmatpush.msra.mxu0 0.0
  %630 = vmatpush.msra.mxu0 0.0
  %631 = vmatpush.msra.mxu0 0.0
  %632 = vmatpush.msra.mxu0 0.0
  %633 = vmatpush.msra.mxu0 %v618
  %634 = vmatpush.msra.mxu0 %v602
  %635 = vmatpush.msra.mxu0 %v586
  %636 = vmatpush.msra.mxu0 %v570
  %637 = vmatpush.msra.mxu0 %v256
  %638 = vmatpush.msra.mxu0 %v554
  %639 = vmatpush.msra.mxu0 %v538
  %640 = vmatpush.msra.mxu0 %v522
  %641 = vmatpush.msra.mxu0 %v506
  %642 = vmatmul.f32.gmra.mxu0 %v624
  %v643 = vpop.f32.mrf.mxu0
  %v644 = vadd.f32 0.0, %v643
  %645 = vdwg.mxu0
  %646 = vmatpush.msra.mxu0 0.0
  %647 = vmatpush.msra.mxu0 0.0
  %648 = vmatpush.msra.mxu0 0.0
  %649 = vmatpush.msra.mxu0 0.0
  %650 = vmatpush.msra.mxu0 0.0
  %651 = vmatpush.msra.mxu0 0.0
  %652 = vmatpush.msra.mxu0 0.0
  %653 = vmatpush.msra.mxu0 %v619
  %654 = vmatpush.msra.mxu0 %v603
  %655 = vmatpush.msra.mxu0 %v587
  %656 = vmatpush.msra.mxu0 %v571
  %657 = vmatpush.msra.mxu0 %v276
  %658 = vmatpush.msra.mxu0 %v555
  %659 = vmatpush.msra.mxu0 %v539
  %660 = vmatpush.msra.mxu0 %v523
  %661 = vmatpush.msra.mxu0 %v507
  %662 = vmatmul.f32.gmra.mxu0 %v624
  %v663 = vpop.f32.mrf.mxu0
  %v664 = vadd.f32 0.0, %v663
  %665 = vdwg.mxu0
  %666 = vmatpush.msra.mxu0 0.0
  %667 = vmatpush.msra.mxu0 0.0
  %668 = vmatpush.msra.mxu0 0.0
  %669 = vmatpush.msra.mxu0 0.0
  %670 = vmatpush.msra.mxu0 0.0
  %671 = vmatpush.msra.mxu0 0.0
  %672 = vmatpush.msra.mxu0 0.0
  %673 = vmatpush.msra.mxu0 %v620
  %674 = vmatpush.msra.mxu0 %v604
  %675 = vmatpush.msra.mxu0 %v588
  %676 = vmatpush.msra.mxu0 %v572
  %677 = vmatpush.msra.mxu0 %v296
  %678 = vmatpush.msra.mxu0 %v556
  %679 = vmatpush.msra.mxu0 %v540
  %680 = vmatpush.msra.mxu0 %v524
  %681 = vmatpush.msra.mxu0 %v508
  %682 = vmatmul.f32.gmra.mxu0 %v624
  %v683 = vpop.f32.mrf.mxu0
  %v684 = vadd.f32 0.0, %v683
  %685 = vdwg.mxu0
  %686 = vmatpush.msra.mxu0 0.0
  %687 = vmatpush.msra.mxu0 0.0
  %688 = vmatpush.msra.mxu0 0.0
  %689 = vmatpush.msra.mxu0 0.0
  %690 = vmatpush.msra.mxu0 0.0
  %691 = vmatpush.msra.mxu0 0.0
  %692 = vmatpush.msra.mxu0 0.0
  %693 = vmatpush.msra.mxu0 %v621
  %694 = vmatpush.msra.mxu0 %v605
  %695 = vmatpush.msra.mxu0 %v589
  %696 = vmatpush.msra.mxu0 %v573
  %697 = vmatpush.msra.mxu0 %v316
  %698 = vmatpush.msra.mxu0 %v557
  %699 = vmatpush.msra.mxu0 %v541
  %700 = vmatpush.msra.mxu0 %v525
  %701 = vmatpush.msra.mxu0 %v509
  %702 = vmatmul.f32.gmra.mxu0 %v624
  %v703 = vpop.f32.mrf.mxu0
  %v704 = vadd.f32 0.0, %v703
  %705 = vdwg.mxu0
  %v707 = vsel %vm622, %v318, 0
  %709 = vmatpush.msra.mxu0 0.0
  %710 = vmatpush.msra.mxu0 0.0
  %711 = vmatpush.msra.mxu0 0.0
  %712 = vmatpush.msra.mxu0 0.0
  %713 = vmatpush.msra.mxu0 0.0
  %714 = vmatpush.msra.mxu0 0.0
  %715 = vmatpush.msra.mxu0 0.0
  %716 = vmatpush.msra.mxu0 %v489
  %717 = vmatpush.msra.mxu0 %v468
  %718 = vmatpush.msra.mxu0 %v447
  %719 = vmatpush.msra.mxu0 %v426
  %720 = vmatpush.msra.mxu0 %v319
  %721 = vmatpush.msra.mxu0 %v405
  %722 = vmatpush.msra.mxu0 %v384
  %723 = vmatpush.msra.mxu0 %v363
  %724 = vmatpush.msra.mxu0 %v342
  %725 = vmatmul.f32.gmra.mxu0 %v707
  %v726 = vpop.f32.mrf.mxu0
  %v727 = vadd.f32 %v644, %v726
  %728 = vdwg.mxu0
  %729 = vmatpush.msra.mxu0 0.0
  %730 = vmatpush.msra.mxu0 0.0
  %731 = vmatpush.msra.mxu0 0.0
  %732 = vmatpush.msra.mxu0 0.0
  %733 = vmatpush.msra.mxu0 0.0
  %734 = vmatpush.msra.mxu0 0.0
  %735 = vmatpush.msra.mxu0 0.0
  %736 = vmatpush.msra.mxu0 %v490
  %737 = vmatpush.msra.mxu0 %v469
  %738 = vmatpush.msra.mxu0 %v448
  %739 = vmatpush.msra.mxu0 %v427
  %740 = vmatpush.msra.mxu0 %v320
  %741 = vmatpush.msra.mxu0 %v406
  %742 = vmatpush.msra.mxu0 %v385
  %743 = vmatpush.msra.mxu0 %v364
  %744 = vmatpush.msra.mxu0 %v343
  %745 = vmatmul.f32.gmra.mxu0 %v707
  %v746 = vpop.f32.mrf.mxu0
  %v747 = vadd.f32 %v664, %v746
  %748 = vdwg.mxu0
  %749 = vmatpush.msra.mxu0 0.0
  %750 = vmatpush.msra.mxu0 0.0
  %751 = vmatpush.msra.mxu0 0.0
  %752 = vmatpush.msra.mxu0 0.0
  %753 = vmatpush.msra.mxu0 0.0
  %754 = vmatpush.msra.mxu0 0.0
  %755 = vmatpush.msra.mxu0 0.0
  %756 = vmatpush.msra.mxu0 %v491
  %757 = vmatpush.msra.mxu0 %v470
  %758 = vmatpush.msra.mxu0 %v449
  %759 = vmatpush.msra.mxu0 %v428
  %760 = vmatpush.msra.mxu0 %v321
  %761 = vmatpush.msra.mxu0 %v407
  %762 = vmatpush.msra.mxu0 %v386
  %763 = vmatpush.msra.mxu0 %v365
  %764 = vmatpush.msra.mxu0 %v344
  %765 = vmatmul.f32.gmra.mxu0 %v707
  %v766 = vpop.f32.mrf.mxu0
  %v767 = vadd.f32 %v684, %v766
  %768 = vdwg.mxu0
  %769 = vmatpush.msra.mxu0 0.0
  %770 = vmatpush.msra.mxu0 0.0
  %771 = vmatpush.msra.mxu0 0.0
  %772 = vmatpush.msra.mxu0 0.0
  %773 = vmatpush.msra.mxu0 0.0
  %774 = vmatpush.msra.mxu0 0.0
  %775 = vmatpush.msra.mxu0 0.0
  %776 = vmatpush.msra.mxu0 %v492
  %777 = vmatpush.msra.mxu0 %v471
  %778 = vmatpush.msra.mxu0 %v450
  %779 = vmatpush.msra.mxu0 %v429
  %780 = vmatpush.msra.mxu0 %v322
  %781 = vmatpush.msra.mxu0 %v408
  %782 = vmatpush.msra.mxu0 %v387
  %783 = vmatpush.msra.mxu0 %v366
  %784 = vmatpush.msra.mxu0 %v345
  %785 = vmatmul.f32.gmra.mxu0 %v707
  %v786 = vpop.f32.mrf.mxu0
  %v787 = vadd.f32 %v704, %v786
  %788 = vdwg.mxu0
  %v789 = vadd.f32 %v727, %v747
  %v790 = vadd.f32 %v789, %v767
  %v791 = vadd.f32 %v790, %v787
  %792 = vadd.xlane.f32.xlu0 %v791
  %v793 = vpop.xlane.xlu0 %792
  %v794 = vmul.f32 %v793, 0.001953125
  %v795 = vmul.f32 %v727, %v727
  %v796 = vmul.f32 %v747, %v747
  %v797 = vmul.f32 %v767, %v767
  %v798 = vmul.f32 %v787, %v787
  %v799 = vadd.f32 %v795, %v796
  %v800 = vadd.f32 %v799, %v797
  %v801 = vadd.f32 %v800, %v798
  %802 = vadd.xlane.f32.xlu0 %v801
  %v803 = vpop.xlane.xlu0 %802
  %v804 = vmul.f32 %v803, 0.001953125
  %v805 = vmul.f32 %v794, %v794
  %v806 = vsub.f32 %v804, %v805
  %v807 = vadd.f32 %v806, 1e-05
  %v808 = vrsqrt.pop %v807
  %v809 = vmul.f32 %v808, %v807
  %v810 = vmul.f32 %v809, %v808
  %v811 = vmul.f32 0.5, %v810
  %v812 = vsub.f32 1.5, %v811
  %v813 = vmul.f32 %v808, %v812
  %vm814 = vweird.f32 %v807
  %vm815 = vweird.f32 %v808
  %vm816 = vmor %vm814, %vm815
  %v817 = vsel %vm816, %v808, %v813
  %v818 = vmul.f32 %v108, %v817
  %v819 = vmul.f32 %v794, %v818
  %821 = vrot.lane.b32.xlu0 %v819, 1
  %v822 = vpop.permute.xlu0 %821
  %v824 = vsub.f32 %v108, %v822
  %826 = vset.pattern.permute.xlu0 9
  %827 = vperm.xlu0 %826, %v818
  %v828 = vpop.permute.xlu0 %827
  %v830 = vmul.f32 %v727, %v828
  %v831 = vmul.f32 %v747, %v828
  %v832 = vmul.f32 %v767, %v828
  %v833 = vmul.f32 %v787, %v828
  %835 = vset.pattern.permute.xlu0 10
  %836 = vperm.xlu0 %835, %v824
  %v837 = vpop.permute.xlu0 %836
  %v839 = vadd.f32 %v830, %v837
  %v840 = vadd.f32 %v831, %v837
  %v841 = vadd.f32 %v832, %v837
  %v842 = vadd.f32 %v833, %v837
  %v843 = vmax.f32 %v839, 0.0
  %v844 = vmax.f32 %v840, 0.0
  %v845 = vmax.f32 %v841, 0.0
  %v846 = vmax.f32 %v842, 0.0
  %v847 = vld [vmem:[%s9] sm:$0xff]
  %848 = vrot.lane.b32.xlu0 %v843, 17
  %v849 = vpop.permute.xlu0 %848
  %850 = vrot.lane.b32.xlu0 %v844, 17
  %v851 = vpop.permute.xlu0 %850
  %852 = vrot.lane.b32.xlu0 %v845, 17
  %v853 = vpop.permute.xlu0 %852
  %854 = vrot.lane.b32.xlu0 %v846, 17
  %v855 = vpop.permute.xlu0 %854
  %v856 = vsel %vm333, %v853, %v855
  %v857 = vsel %vm333, %v851, %v853
  %v858 = vsel %vm333, %v849, %v851
  %v859 = vsel %vm333, %v855, %v849
  %v860 = vmul.f32 %v859, %v338
  %v861 = vmul.f32 %v858, %v339
  %v862 = vmul.f32 %v857, %v340
  %v863 = vmul.f32 %v856, %v341
  %864 = vrot.lane.b32.xlu0 %v843, 16
  %v865 = vpop.permute.xlu0 %864
  %866 = vrot.lane.b32.xlu0 %v844, 16
  %v867 = vpop.permute.xlu0 %866
  %868 = vrot.lane.b32.xlu0 %v845, 16
  %v869 = vpop.permute.xlu0 %868
  %870 = vrot.lane.b32.xlu0 %v846, 16
  %v871 = vpop.permute.xlu0 %870
  %v872 = vsel %vm354, %v869, %v871
  %v873 = vsel %vm354, %v867, %v869
  %v874 = vsel %vm354, %v865, %v867
  %v875 = vsel %vm354, %v871, %v865
  %v876 = vmul.f32 %v875, %v359
  %v877 = vmul.f32 %v874, %v360
  %v878 = vmul.f32 %v873, %v361
  %v879 = vmul.f32 %v872, %v362
  %880 = vrot.lane.b32.xlu0 %v843, 15
  %v881 = vpop.permute.xlu0 %880
  %882 = vrot.lane.b32.xlu0 %v844, 15
  %v883 = vpop.permute.xlu0 %882
  %884 = vrot.lane.b32.xlu0 %v845, 15
  %v885 = vpop.permute.xlu0 %884
  %886 = vrot.lane.b32.xlu0 %v846, 15
  %v887 = vpop.permute.xlu0 %886
  %v888 = vsel %vm375, %v885, %v887
  %v889 = vsel %vm375, %v883, %v885
  %v890 = vsel %vm375, %v881, %v883
  %v891 = vsel %vm375, %v887, %v881
  %v892 = vmul.f32 %v891, %v380
  %v893 = vmul.f32 %v890, %v381
  %v894 = vmul.f32 %v889, %v382
  %v895 = vmul.f32 %v888, %v383
  %896 = vrot.lane.b32.xlu0 %v843, 1
  %v897 = vpop.permute.xlu0 %896
  %898 = vrot.lane.b32.xlu0 %v844, 1
  %v899 = vpop.permute.xlu0 %898
  %900 = vrot.lane.b32.xlu0 %v845, 1
  %v901 = vpop.permute.xlu0 %900
  %902 = vrot.lane.b32.xlu0 %v846, 1
  %v903 = vpop.permute.xlu0 %902
  %v904 = vsel %vm396, %v901, %v903
  %v905 = vsel %vm396, %v899, %v901
  %v906 = vsel %vm396, %v897, %v899
  %v907 = vsel %vm396, %v903, %v897
  %v908 = vmul.f32 %v907, %v401
  %v909 = vmul.f32 %v906, %v402
  %v910 = vmul.f32 %v905, %v403
  %v911 = vmul.f32 %v904, %v404
  %912 = vrot.lane.b32.xlu0 %v843, 127
  %v913 = vpop.permute.xlu0 %912
  %914 = vrot.lane.b32.xlu0 %v844, 127
  %v915 = vpop.permute.xlu0 %914
  %916 = vrot.lane.b32.xlu0 %v845, 127
  %v917 = vpop.permute.xlu0 %916
  %918 = vrot.lane.b32.xlu0 %v846, 127
  %v919 = vpop.permute.xlu0 %918
  %v920 = vsel %vm417, %v917, %v919
  %v921 = vsel %vm417, %v915, %v917
  %v922 = vsel %vm417, %v913, %v915
  %v923 = vsel %vm417, %v919, %v913
  %v924 = vmul.f32 %v922, %v422
  %v925 = vmul.f32 %v921, %v423
  %v926 = vmul.f32 %v920, %v424
  %v927 = vmul.f32 %v923, %v425
  %928 = vrot.lane.b32.xlu0 %v843, 113
  %v929 = vpop.permute.xlu0 %928
  %930 = vrot.lane.b32.xlu0 %v844, 113
  %v931 = vpop.permute.xlu0 %930
  %932 = vrot.lane.b32.xlu0 %v845, 113
  %v933 = vpop.permute.xlu0 %932
  %934 = vrot.lane.b32.xlu0 %v846, 113
  %v935 = vpop.permute.xlu0 %934
  %v936 = vsel %vm438, %v933, %v935
  %v937 = vsel %vm438, %v931, %v933
  %v938 = vsel %vm438, %v929, %v931
  %v939 = vsel %vm438, %v935, %v929
  %v940 = vmul.f32 %v938, %v443
  %v941 = vmul.f32 %v937, %v444
  %v942 = vmul.f32 %v936, %v445
  %v943 = vmul.f32 %v939, %v446
  %944 = vrot.lane.b32.xlu0 %v843, 112
  %v945 = vpop.permute.xlu0 %944
  %946 = vrot.lane.b32.xlu0 %v844, 112
  %v947 = vpop.permute.xlu0 %946
  %948 = vrot.lane.b32.xlu0 %v845, 112
  %v949 = vpop.permute.xlu0 %948
  %950 = vrot.lane.b32.xlu0 %v846, 112
  %v951 = vpop.permute.xlu0 %950
  %v952 = vsel %vm459, %v949, %v951
  %v953 = vsel %vm459, %v947, %v949
  %v954 = vsel %vm459, %v945, %v947
  %v955 = vsel %vm459, %v951, %v945
  %v956 = vmul.f32 %v954, %v464
  %v957 = vmul.f32 %v953, %v465
  %v958 = vmul.f32 %v952, %v466
  %v959 = vmul.f32 %v955, %v467
  %960 = vrot.lane.b32.xlu0 %v843, 111
  %v961 = vpop.permute.xlu0 %960
  %962 = vrot.lane.b32.xlu0 %v844, 111
  %v963 = vpop.permute.xlu0 %962
  %964 = vrot.lane.b32.xlu0 %v845, 111
  %v965 = vpop.permute.xlu0 %964
  %966 = vrot.lane.b32.xlu0 %v846, 111
  %v967 = vpop.permute.xlu0 %966
  %v968 = vsel %vm480, %v965, %v967
  %v969 = vsel %vm480, %v963, %v965
  %v970 = vsel %vm480, %v961, %v963
  %v971 = vsel %vm480, %v967, %v961
  %v972 = vmul.f32 %v970, %v485
  %v973 = vmul.f32 %v969, %v486
  %v974 = vmul.f32 %v968, %v487
  %v975 = vmul.f32 %v971, %v488
  %v977 = vsel %vm622, %v847, 0
  %979 = vmatpush.msra.mxu0 0.0
  %980 = vmatpush.msra.mxu0 0.0
  %981 = vmatpush.msra.mxu0 0.0
  %982 = vmatpush.msra.mxu0 0.0
  %983 = vmatpush.msra.mxu0 0.0
  %984 = vmatpush.msra.mxu0 0.0
  %985 = vmatpush.msra.mxu0 0.0
  %986 = vmatpush.msra.mxu0 %v972
  %987 = vmatpush.msra.mxu0 %v956
  %988 = vmatpush.msra.mxu0 %v940
  %989 = vmatpush.msra.mxu0 %v924
  %990 = vmatpush.msra.mxu0 %v843
  %991 = vmatpush.msra.mxu0 %v908
  %992 = vmatpush.msra.mxu0 %v892
  %993 = vmatpush.msra.mxu0 %v876
  %994 = vmatpush.msra.mxu0 %v860
  %995 = vmatmul.f32.gmra.mxu0 %v977
  %v996 = vpop.f32.mrf.mxu0
  %v997 = vadd.f32 0.0, %v996
  %998 = vdwg.mxu0
  %999 = vmatpush.msra.mxu0 0.0
  %1000 = vmatpush.msra.mxu0 0.0
  %1001 = vmatpush.msra.mxu0 0.0
  %1002 = vmatpush.msra.mxu0 0.0
  %1003 = vmatpush.msra.mxu0 0.0
  %1004 = vmatpush.msra.mxu0 0.0
  %1005 = vmatpush.msra.mxu0 0.0
  %1006 = vmatpush.msra.mxu0 %v973
  %1007 = vmatpush.msra.mxu0 %v957
  %1008 = vmatpush.msra.mxu0 %v941
  %1009 = vmatpush.msra.mxu0 %v925
  %1010 = vmatpush.msra.mxu0 %v844
  %1011 = vmatpush.msra.mxu0 %v909
  %1012 = vmatpush.msra.mxu0 %v893
  %1013 = vmatpush.msra.mxu0 %v877
  %1014 = vmatpush.msra.mxu0 %v861
  %1015 = vmatmul.f32.gmra.mxu0 %v977
  %v1016 = vpop.f32.mrf.mxu0
  %v1017 = vadd.f32 0.0, %v1016
  %1018 = vdwg.mxu0
  %1019 = vmatpush.msra.mxu0 0.0
  %1020 = vmatpush.msra.mxu0 0.0
  %1021 = vmatpush.msra.mxu0 0.0
  %1022 = vmatpush.msra.mxu0 0.0
  %1023 = vmatpush.msra.mxu0 0.0
  %1024 = vmatpush.msra.mxu0 0.0
  %1025 = vmatpush.msra.mxu0 0.0
  %1026 = vmatpush.msra.mxu0 %v974
  %1027 = vmatpush.msra.mxu0 %v958
  %1028 = vmatpush.msra.mxu0 %v942
  %1029 = vmatpush.msra.mxu0 %v926
  %1030 = vmatpush.msra.mxu0 %v845
  %1031 = vmatpush.msra.mxu0 %v910
  %1032 = vmatpush.msra.mxu0 %v894
  %1033 = vmatpush.msra.mxu0 %v878
  %1034 = vmatpush.msra.mxu0 %v862
  %1035 = vmatmul.f32.gmra.mxu0 %v977
  %v1036 = vpop.f32.mrf.mxu0
  %v1037 = vadd.f32 0.0, %v1036
  %1038 = vdwg.mxu0
  %1039 = vmatpush.msra.mxu0 0.0
  %1040 = vmatpush.msra.mxu0 0.0
  %1041 = vmatpush.msra.mxu0 0.0
  %1042 = vmatpush.msra.mxu0 0.0
  %1043 = vmatpush.msra.mxu0 0.0
  %1044 = vmatpush.msra.mxu0 0.0
  %1045 = vmatpush.msra.mxu0 0.0
  %1046 = vmatpush.msra.mxu0 %v975
  %1047 = vmatpush.msra.mxu0 %v959
  %1048 = vmatpush.msra.mxu0 %v943
  %1049 = vmatpush.msra.mxu0 %v927
  %1050 = vmatpush.msra.mxu0 %v846
  %1051 = vmatpush.msra.mxu0 %v911
  %1052 = vmatpush.msra.mxu0 %v895
  %1053 = vmatpush.msra.mxu0 %v879
  %1054 = vmatpush.msra.mxu0 %v863
  %1055 = vmatmul.f32.gmra.mxu0 %v977
  %v1056 = vpop.f32.mrf.mxu0
  %v1057 = vadd.f32 0.0, %v1056
  %1058 = vdwg.mxu0
  %v1059 = vadd.f32 %v997, %v1017
  %v1060 = vadd.f32 %v1059, %v1037
  %v1061 = vadd.f32 %v1060, %v1057
  %1062 = vadd.xlane.f32.xlu0 %v1061
  %v1063 = vpop.xlane.xlu0 %1062
  %v1064 = vmul.f32 %v1063, 0.001953125
  %v1065 = vmul.f32 %v997, %v997
  %v1066 = vmul.f32 %v1017, %v1017
  %v1067 = vmul.f32 %v1037, %v1037
  %v1068 = vmul.f32 %v1057, %v1057
  %v1069 = vadd.f32 %v1065, %v1066
  %v1070 = vadd.f32 %v1069, %v1067
  %v1071 = vadd.f32 %v1070, %v1068
  %1072 = vadd.xlane.f32.xlu0 %v1071
  %v1073 = vpop.xlane.xlu0 %1072
  %v1074 = vmul.f32 %v1073, 0.001953125
  %v1075 = vmul.f32 %v1064, %v1064
  %v1076 = vsub.f32 %v1074, %v1075
  %v1077 = vadd.f32 %v1076, 1e-05
  %v1078 = vrsqrt.pop %v1077
  %v1079 = vmul.f32 %v1078, %v1077
  %v1080 = vmul.f32 %v1079, %v1078
  %v1081 = vmul.f32 0.5, %v1080
  %v1082 = vsub.f32 1.5, %v1081
  %v1083 = vmul.f32 %v1078, %v1082
  %vm1084 = vweird.f32 %v1077
  %vm1085 = vweird.f32 %v1078
  %vm1086 = vmor %vm1084, %vm1085
  %v1087 = vsel %vm1086, %v1078, %v1083
  %v1088 = vmul.f32 %v108, %v1087
  %v1089 = vmul.f32 %v1064, %v1088
  %1091 = vrot.lane.b32.xlu0 %v1089, 1
  %v1092 = vpop.permute.xlu0 %1091
  %v1094 = vsub.f32 %v108, %v1092
  %1096 = vset.pattern.permute.xlu0 11
  %1097 = vperm.xlu0 %1096, %v1088
  %v1098 = vpop.permute.xlu0 %1097
  %v1100 = vmul.f32 %v997, %v1098
  %v1101 = vmul.f32 %v1017, %v1098
  %v1102 = vmul.f32 %v1037, %v1098
  %v1103 = vmul.f32 %v1057, %v1098
  %1105 = vset.pattern.permute.xlu0 12
  %1106 = vperm.xlu0 %1105, %v1094
  %v1107 = vpop.permute.xlu0 %1106
  %v1109 = vadd.f32 %v1100, %v1107
  %v1110 = vadd.f32 %v1101, %v1107
  %v1111 = vadd.f32 %v1102, %v1107
  %v1112 = vadd.f32 %v1103, %v1107
  %v1113 = vmax.f32 %v1109, 0.0
  %v1114 = vmax.f32 %v1110, 0.0
  %v1115 = vmax.f32 %v1111, 0.0
  %v1116 = vmax.f32 %v1112, 0.0
  %1117 = vst [vmem:[%s10] sm:$0xff] %v1113
  %1118 = vst [vmem:[%s10 + $0x8] sm:$0xff] %v1114
  %1119 = vst [vmem:[%s10 + $0x10] sm:$0xff] %v1115
  %1120 = vst [vmem:[%s10 + $0x18] sm:$0xff] %v1116
  // Predicated region
  $region42: #{up_forward.1} parent=0 // pred_check
    _
  $region43: #{up_forward.1} parent=0 // pred_check_branch
    %1122 = sbr.rel (0) target = $region45
  $region44: #{up_forward.1} parent=0 // pred_region
    _
  $region45: #{up_forward.1} parent=0 // pred_fallthru
    _
  // Predicated region
  $region46: #{up_forward.1} parent=0 // pred_check
    _
  $region47: #{up_forward.1} parent=0 // pred_check_branch
    %1124 = sbr.rel (0) target = $region49
  $region48: #{up_forward.1} parent=0 // pred_region
    _
  $region49: #{up_forward.1} parent=0 // pred_fallthru
    _

</llo_original>
